<compile_context>
chip_gen: v5e
topology: v5e:2x2
jax: 0.10.0
libtpu: 0.0.40
codegen_flags: <defaults>
</compile_context>

<pallas_src>
import functools
import math

import jax
import jax.numpy as jnp
from jax.experimental import pallas as pl
from jax.experimental.pallas import tpu as pltpu

F32 = jnp.float32
BF16 = jnp.bfloat16
_HI = jax.lax.Precision.HIGHEST


def _sigmoid(v):
    return 1.0 / (1.0 + jnp.exp(-v))


def _softplus(v):
    return jnp.maximum(v, 0.0) + jnp.log(1.0 + jnp.exp(-jnp.abs(v)))


def _round_up(v, m):
    return ((v + m - 1) // m) * m


# ----------------------------------------------------------------------------
# Pallas kernel: grid step = (batch element, sequence chunk).
# ----------------------------------------------------------------------------
def _mamba_kernel(x_ref, w_in_ref, cw_ref, cb_ref, w_xp_ref, dtb_ref,
                  aneg_ref, dskip_ref, w_out_ref, out_ref,
                  xs_pad_ref, da_ref, dbx_ref, ss_ref, state_ref):
    chunk = pl.program_id(1)
    lc = x_ref.shape[1]
    k_conv, d_inner = cw_ref.shape
    d_state = aneg_ref.shape[0]
    pad = xs_pad_ref.shape[0] - lc                    # aligned lead rows (>= K-1)

    # ---- first chunk of a batch: reset carried SSM state + conv tail --------
    @pl.when(chunk == 0)
    def _():
        state_ref[...] = jnp.zeros_like(state_ref)
        xs_pad_ref[0:pad, :] = jnp.zeros((pad, d_inner), F32)

    # ---- fused in_proj: one bf16 MXU pass -> conv branch xs and gate z ------
    x = x_ref[0].astype(BF16)                                         # (lc, D)
    xz = jnp.dot(x, w_in_ref[...], preferred_element_type=F32)        # (lc, 2*d_inner)
    xs = xz[:, :d_inner]
    z = xz[:, d_inner:]

    # ---- causal depthwise conv over L (carry = last K-1 rows of prev chunk) -
    xs_pad_ref[pad:pad + lc, :] = xs                                   # aligned store
    cw = cw_ref[...]                                                   # (K, d_inner)
    acc = cb_ref[...]
    for k in range(k_conv):
        acc = acc + xs_pad_ref[pad - (k_conv - 1) + k:
                               pad - (k_conv - 1) + k + lc, :] * cw[k:k + 1, :]
    xc = acc * _sigmoid(acc)                                           # SiLU, (lc, d_inner)
    # carry for next chunk (stored after all shifted reads above)
    xs_pad_ref[pad - (k_conv - 1):pad, :] = xs[lc - (k_conv - 1):, :]

    # ---- fused x_proj (dt_proj folded in): one bf16 MXU pass -----------------
    proj = jnp.dot(xc.astype(BF16), w_xp_ref[...], preferred_element_type=F32)
    dt = _softplus(proj[:, :d_inner] + dtb_ref[...])                   # (lc, d_inner)
    bm = proj[:, d_inner:d_inner + d_state]                            # (lc, d_state)
    cm = proj[:, d_inner + d_state:d_inner + 2 * d_state]              # (lc, d_state)

    # ---- hoist state-independent work out of the recurrence ------------------
    #   dA  rows (n-major, t-minor): row n*lc + t = exp(dt_t * A_n)
    #   dBx rows (n-major, t-minor): row n*lc + t = B_t[n] * (dt_t * x_t)
    aneg = aneg_ref[...]                                               # (d_state, d_inner)
    dtx = dt * xc
    for n in range(d_state):                                           # d_state is small/static
        da_ref[pl.ds(n * lc, lc), :] = jnp.exp(dt * aneg[n:n + 1, :])
        dbx_ref[pl.ds(n * lc, lc), :] = bm[:, n:n + 1] * dtx

    # ---- selective scan: only  s = dA*s + dBx  on the serial chain -----------
    # states stored t-major (row t*d_state + n) so the per-step store is
    # a single contiguous aligned block.
    def step(t, s):
        src = pl.ds(t, d_state, stride=lc)
        s = da_ref[src, :] * s + dbx_ref[src, :]
        ss_ref[pl.ds(t * d_state, d_state), :] = s
        return s

    state_ref[...] = jax.lax.fori_loop(0, lc, step, state_ref[...])

    # ---- y_t = C_t . s_t + D * x_t  (vectorized, off the critical path) ------
    y = dskip_ref[...] * xc
    for n in range(d_state):
        y = y + cm[:, n:n + 1] * ss_ref[pl.ds(n, lc, stride=d_state), :]

    # ---- gate with SiLU(z), out_proj into a lane-dense (padded) output slab --
    y = y * (z * _sigmoid(z))
    out = jnp.dot(y.astype(BF16), w_out_ref[...], preferred_element_type=F32)
    out_ref[0] = out.astype(out_ref.dtype)


# ----------------------------------------------------------------------------
# Parameter construction (deterministic, synthetic; shapes follow the module).
# ----------------------------------------------------------------------------
def make_params(key, d_model, d_state, d_conv, expand):
    d_inner = expand * d_model
    dt_rank = math.ceil(d_model / 16)
    k0, k1, k2, k3, k4, k5 = jax.random.split(key, 6)

    w_in = 0.1 * jax.random.normal(k0, (2 * d_inner, d_model), F32)        # in_proj (out,in)
    conv_w = 0.3 * jax.random.normal(k1, (d_inner, d_conv), F32)           # conv1d (C,1,K) squeezed
    conv_b = 0.1 * jax.random.normal(k2, (d_inner,), F32)
    w_xproj = 0.1 * jax.random.normal(k3, (dt_rank + 2 * d_state, d_inner), F32)
    w_dtproj = (dt_rank ** -0.5) * jax.random.normal(k4, (d_inner, dt_rank), F32)
    # dt_proj bias = inverse-softplus of dt in [1e-3, 1e-1] (standard Mamba init)
    dt_vals = jnp.exp(jnp.linspace(jnp.log(1e-3), jnp.log(1e-1), d_inner)).astype(F32)
    dt_bias = dt_vals + jnp.log(-jnp.expm1(-dt_vals))
    a = jnp.tile(jnp.arange(1, d_state + 1, dtype=F32)[None, :], (d_inner, 1))
    a_log = jnp.log(a)                                                     # (d_inner, d_state)
    d_skip = jnp.ones((d_inner,), F32)
    w_out = 0.1 * jax.random.normal(k5, (d_model, d_inner), F32)           # out_proj (out,in)

    return dict(
        w_x_in=jnp.asarray(w_in[:d_inner].T),            # (D, d_inner)
        w_z_in=jnp.asarray(w_in[d_inner:].T),            # (D, d_inner)
        conv_w=jnp.asarray(conv_w.T),                    # (d_conv, d_inner)
        conv_b=conv_b[None, :],                          # (1, d_inner)
        w_dt_low=jnp.asarray(w_xproj[:dt_rank].T),       # (d_inner, dt_rank)
        w_b=jnp.asarray(w_xproj[dt_rank:dt_rank + d_state].T),   # (d_inner, d_state)
        w_c=jnp.asarray(w_xproj[dt_rank + d_state:].T),  # (d_inner, d_state)
        w_dt=jnp.asarray(w_dtproj.T),                    # (dt_rank, d_inner)
        dt_bias=dt_bias[None, :],                        # (1, d_inner)
        a_log_t=jnp.asarray(a_log.T),                    # (d_state, d_inner)
        d_skip=d_skip[None, :],                          # (1, d_inner)
        w_out_t=jnp.asarray(w_out.T),                    # (d_inner, D)
    )


def _prepare_kernel_params(p):
    """Fuse / fold / pad / bf16-cast the raw params for the kernel."""
    d_inner = p["w_dt"].shape[1]
    d_model = p["w_out_t"].shape[1]
    dp = _round_up(d_model, 128)
    # fused in_proj: [x-branch | z-gate]
    w_in = jnp.concatenate([p["w_x_in"], p["w_z_in"]], axis=1).astype(BF16)
    # fold low-rank dt_proj into x_proj, then fuse [dt_full | B | C]
    w_dt_full = jnp.matmul(p["w_dt_low"], p["w_dt"], precision=_HI)        # (d_inner, d_inner)
    w_xp = jnp.concatenate([w_dt_full, p["w_b"], p["w_c"]], axis=1).astype(BF16)
    # lane-pad out_proj so the output store is lane-dense (128 multiple)
    w_out = jnp.pad(p["w_out_t"], ((0, 0), (0, dp - d_model))).astype(BF16)
    a_neg = -jnp.exp(p["a_log_t"])                                         # (d_state, d_inner)
    return (w_in, p["conv_w"], p["conv_b"], w_xp, p["dt_bias"], a_neg,
            p["d_skip"], w_out)


# ----------------------------------------------------------------------------
# Wrapper == MambaBlock.forward(x, need_cache=False) -> (out, None)
# ----------------------------------------------------------------------------
@functools.partial(jax.jit, static_argnames=("seq_chunk",))
def mamba_block_forward(x, params, seq_chunk=256):
    b, l, d = x.shape
    lc = min(l, seq_chunk)
    if l % lc != 0:
        raise ValueError(f"seq len {l} must be a multiple of the chunk {lc}")
    if lc % 8 != 0 and lc != l:
        raise ValueError("sequence chunk must be a multiple of 8")
    nchunks = l // lc

    weights = _prepare_kernel_params(params)
    (w_in, conv_w, conv_b, w_xp, dt_bias, a_neg, d_skip, w_out) = weights
    k_conv, d_inner = conv_w.shape
    d_state = a_neg.shape[0]
    dp = w_out.shape[1]
    pad_rows = _round_up(k_conv - 1, 8)

    in_specs = [pl.BlockSpec((1, lc, d), lambda i, j: (i, j, 0))]
    in_specs += [pl.BlockSpec(w.shape, lambda i, j: (0, 0)) for w in weights]

    out_padded = pl.pallas_call(
        _mamba_kernel,
        out_shape=jax.ShapeDtypeStruct((b, l, dp), x.dtype),
        grid=(b, nchunks),
        in_specs=in_specs,
        out_specs=pl.BlockSpec((1, lc, dp), lambda i, j: (i, j, 0)),
        scratch_shapes=[
            pltpu.VMEM((lc + pad_rows, d_inner), F32),       # conv input + carried tail
            pltpu.VMEM((d_state * lc, d_inner), F32),        # dA   (n-major, t-minor)
            pltpu.VMEM((d_state * lc, d_inner), F32),        # dBx  (n-major, t-minor)
            pltpu.VMEM((lc * d_state, d_inner), F32),        # states (t-major)
            pltpu.VMEM((d_state, d_inner), F32),             # carried SSM state
        ],
        compiler_params=pltpu.CompilerParams(
            dimension_semantics=("parallel", "arbitrary"),
            vmem_limit_bytes=48 * 1024 * 1024,               # headroom vs v7x 64 MiB
        ),
    )(x, *weights)
    # TODO(synk): MambaCache conv_state/ssm_state writeback (incremental decode
    # path) is not implemented; only the full-sequence forward (need_cache=False).
    return out_padded[:, :, :d], None


# ----------------------------------------------------------------------------
# Pure-JAX reference (f32, unfused) for verification.
# ----------------------------------------------------------------------------
def mamba_block_reference(x, p):
    L = x.shape[1]
    xs = jnp.matmul(x, p["w_x_in"], precision=_HI)
    z = jnp.matmul(x, p["w_z_in"], precision=_HI)
    cw = p["conv_w"]
    K = cw.shape[0]
    vp = jnp.pad(xs, ((0, 0), (K - 1, 0), (0, 0)))
    acc = sum(vp[:, k:k + L, :] * cw[k][None, None, :] for k in range(K)) + p["conv_b"]
    xc = acc * _sigmoid(acc)
    dt_low = jnp.matmul(xc, p["w_dt_low"], precision=_HI)
    bm = jnp.matmul(xc, p["w_b"], precision=_HI)
    cm = jnp.matmul(xc, p["w_c"], precision=_HI)
    dt = _softplus(jnp.matmul(dt_low, p["w_dt"], precision=_HI) + p["dt_bias"])
    a = -jnp.exp(p["a_log_t"]).T                         # (d_inner, d_state)
    d_skip = p["d_skip"][0]
    d_inner, d_state = a.shape

    def scan_one(xc_b, dt_b, bm_b, cm_b):
        def step(h, inp):
            xc_t, dt_t, b_t, c_t = inp
            da = jnp.exp(dt_t[:, None] * a)
            h = da * h + (dt_t * xc_t)[:, None] * b_t[None, :]
            y_t = jnp.sum(h * c_t[None, :], axis=-1) + d_skip * xc_t
            return h, y_t
        h0 = jnp.zeros((d_inner, d_state), F32)
        _, ys = jax.lax.scan(step, h0, (xc_b, dt_b, bm_b, cm_b))
        return ys

    y = jax.vmap(scan_one)(xc, dt, bm, cm)
    y = y * (z * _sigmoid(z))
    return jnp.matmul(y, p["w_out_t"], precision=_HI)


if __name__ == "__main__":
    # MambaBlock(io_size=64, d_state=16, d_conv=4, expand=2); batch=2, seq=16.
    # seq_chunk=8 -> two sequence chunks per batch, exercising the carried
    # conv-tail / SSM-state path.
    B, L, D = 2, 16, 64
    d_state, d_conv, expand = 16, 4, 2

    key = jax.random.PRNGKey(0)
    kx, kp = jax.random.split(key)
    x = jax.random.normal(kx, (B, L, D), F32)
    params = make_params(kp, D, d_state, d_conv, expand)

    out, cache = mamba_block_forward(x, params, seq_chunk=8)
    out = jax.block_until_ready(out)
    assert out.shape == (B, L, D)
    assert cache is None

    ref = mamba_block_reference(x, params)
    rel_err = float(jnp.max(jnp.abs(out - ref)) / (jnp.max(jnp.abs(ref)) + 1e-6))
    # Kernel uses bf16 MXU matmuls (per perf review); reference is f32 HIGHEST,
    # so the tolerance is looser than a pure-f32 comparison.
    assert rel_err < 7e-2, f"kernel/reference mismatch: rel_err={rel_err}"
    print("KERNEL_OK")
</pallas_src>

<mosaic_0001>
module attributes {stable_mosaic.version = 11 : i64} {
  func.func @_mamba_kernel(%arg0: i32, %arg1: i32, %arg2: memref<1x8x64xf32, #tpu.memory_space<vmem>>, %arg3: memref<64x256xbf16, #tpu.memory_space<vmem>>, %arg4: memref<4x128xf32, #tpu.memory_space<vmem>>, %arg5: memref<1x128xf32, #tpu.memory_space<vmem>>, %arg6: memref<128x160xbf16, #tpu.memory_space<vmem>>, %arg7: memref<1x128xf32, #tpu.memory_space<vmem>>, %arg8: memref<16x128xf32, #tpu.memory_space<vmem>>, %arg9: memref<1x128xf32, #tpu.memory_space<vmem>>, %arg10: memref<128x128xbf16, #tpu.memory_space<vmem>>, %arg11: memref<1x8x128xf32, #tpu.memory_space<vmem>>, %arg12: memref<16x128xf32, #tpu.memory_space<vmem>>, %arg13: memref<128x128xf32, #tpu.memory_space<vmem>>, %arg14: memref<128x128xf32, #tpu.memory_space<vmem>>, %arg15: memref<128x128xf32, #tpu.memory_space<vmem>>, %arg16: memref<16x128xf32, #tpu.memory_space<vmem>>) attributes {dimension_semantics = [#tpu.dimension_semantics<parallel>, #tpu.dimension_semantics<arbitrary>], iteration_bounds = array<i64: 2, 2>, scalar_prefetch = 0 : i64, scratch_operands = 5 : i64, tpu.core_type = #tpu.core_type<tc>, window_params = [{transform_indices = @transform_0, window_bounds = array<i64: 1, 8, 64>}, {pipeline_mode = #tpu.pipeline_mode<synchronous>, transform_indices = @transform_1, window_bounds = array<i64: 64, 256>}, {pipeline_mode = #tpu.pipeline_mode<synchronous>, transform_indices = @transform_2, window_bounds = array<i64: 4, 128>}, {pipeline_mode = #tpu.pipeline_mode<synchronous>, transform_indices = @transform_3, window_bounds = array<i64: 1, 128>}, {pipeline_mode = #tpu.pipeline_mode<synchronous>, transform_indices = @transform_4, window_bounds = array<i64: 128, 160>}, {pipeline_mode = #tpu.pipeline_mode<synchronous>, transform_indices = @transform_5, window_bounds = array<i64: 1, 128>}, {pipeline_mode = #tpu.pipeline_mode<synchronous>, transform_indices = @transform_6, window_bounds = array<i64: 16, 128>}, {pipeline_mode = #tpu.pipeline_mode<synchronous>, transform_indices = @transform_7, window_bounds = array<i64: 1, 128>}, {pipeline_mode = #tpu.pipeline_mode<synchronous>, transform_indices = @transform_8, window_bounds = array<i64: 128, 128>}, {transform_indices = @transform_9, window_bounds = array<i64: 1, 8, 128>}]} {
    %c0_i32 = arith.constant 0 : i32
    %0 = arith.cmpi eq, %arg1, %c0_i32 : i32
    %1 = arith.extui %0 : i1 to i32
    %c0_i32_0 = arith.constant 0 : i32
    %2 = arith.cmpi ne, %1, %c0_i32_0 : i32
    scf.if %2 {
      %cst_118 = arith.constant 0.000000e+00 : f32
      %311 = vector.broadcast %cst_118 : f32 to vector<16x128xf32>
      %c0_119 = arith.constant 0 : index
      %c0_120 = arith.constant 0 : index
      %312 = vector.load %arg16[%c0_119, %c0_120] : memref<16x128xf32, #tpu.memory_space<vmem>>, vector<16x128xf32>
      tpu.vector_store %arg16[%c0_119, %c0_120], %311 {strides = array<i32>} : memref<16x128xf32, #tpu.memory_space<vmem>>, vector<16x128xf32>,
      %cst_121 = arith.constant 0.000000e+00 : f32
      %313 = vector.broadcast %cst_121 : f32 to vector<8x128xf32>
      %c0_122 = arith.constant 0 : index
      %c0_123 = arith.constant 0 : index
      %314 = vector.load %arg12[%c0_122, %c0_123] : memref<16x128xf32, #tpu.memory_space<vmem>>, vector<8x128xf32>
      tpu.vector_store %arg12[%c0_122, %c0_123], %313 {strides = array<i32>} : memref<16x128xf32, #tpu.memory_space<vmem>>, vector<8x128xf32>,
    } else {
    }
    %c0 = arith.constant 0 : index
    %c0_1 = arith.constant 0 : index
    %c0_2 = arith.constant 0 : index
    %3 = vector.load %arg2[%c0, %c0_1, %c0_2] : memref<1x8x64xf32, #tpu.memory_space<vmem>>, vector<1x8x64xf32>
    %4 = vector.shape_cast %3 : vector<1x8x64xf32> to vector<8x64xf32>
    %5 = arith.truncf %4 : vector<8x64xf32> to vector<8x64xbf16>
    %c0_3 = arith.constant 0 : index
    %c0_4 = arith.constant 0 : index
    %6 = vector.load %arg3[%c0_3, %c0_4] : memref<64x256xbf16, #tpu.memory_space<vmem>>, vector<64x256xbf16>
    %cst = arith.constant dense<0.000000e+00> : vector<8x256xf32>
    %7 = tpu.matmul %5, %6, %cst {dimension_numbers = #tpu.dot_dimension_numbers<[1], [0], [0], [1], [0, 0, 1, 1], [], []>} : vector<8x64xbf16>, vector<64x256xbf16>, vector<8x256xf32> -> vector<8x256xf32>
    %8 = vector.extract_strided_slice %7 {offsets = [0, 0], sizes = [8, 128], strides = [1, 1]} : vector<8x256xf32> to vector<8x128xf32>
    %9 = vector.extract_strided_slice %7 {offsets = [0, 128], sizes = [8, 128], strides = [1, 1]} : vector<8x256xf32> to vector<8x128xf32>
    %c8 = arith.constant 8 : index
    %c0_5 = arith.constant 0 : index
    %10 = vector.load %arg12[%c8, %c0_5] : memref<16x128xf32, #tpu.memory_space<vmem>>, vector<8x128xf32>
    tpu.vector_store %arg12[%c8, %c0_5], %8 {strides = array<i32>} : memref<16x128xf32, #tpu.memory_space<vmem>>, vector<8x128xf32>,
    %c0_6 = arith.constant 0 : index
    %c0_7 = arith.constant 0 : index
    %11 = vector.load %arg4[%c0_6, %c0_7] : memref<4x128xf32, #tpu.memory_space<vmem>>, vector<4x128xf32>
    %c0_8 = arith.constant 0 : index
    %c0_9 = arith.constant 0 : index
    %12 = vector.load %arg5[%c0_8, %c0_9] : memref<1x128xf32, #tpu.memory_space<vmem>>, vector<1x128xf32>
    %c5 = arith.constant 5 : index
    %c0_10 = arith.constant 0 : index
    %13 = vector.load %arg12[%c5, %c0_10] : memref<16x128xf32, #tpu.memory_space<vmem>>, vector<8x128xf32>
    %14 = vector.extract_strided_slice %11 {offsets = [0, 0], sizes = [1, 128], strides = [1, 1]} : vector<4x128xf32> to vector<1x128xf32>
    %15 = vector.broadcast %14 : vector<1x128xf32> to vector<8x128xf32>
    %16 = arith.mulf %13, %15 : vector<8x128xf32>
    %17 = vector.broadcast %12 : vector<1x128xf32> to vector<8x128xf32>
    %18 = arith.addf %17, %16 : vector<8x128xf32>
    %c6 = arith.constant 6 : index
    %c0_11 = arith.constant 0 : index
    %19 = vector.load %arg12[%c6, %c0_11] : memref<16x128xf32, #tpu.memory_space<vmem>>, vector<8x128xf32>
    %20 = vector.extract_strided_slice %11 {offsets = [1, 0], sizes = [1, 128], strides = [1, 1]} : vector<4x128xf32> to vector<1x128xf32>
    %21 = vector.broadcast %20 : vector<1x128xf32> to vector<8x128xf32>
    %22 = arith.mulf %19, %21 : vector<8x128xf32>
    %23 = arith.addf %18, %22 : vector<8x128xf32>
    %c7 = arith.constant 7 : index
    %c0_12 = arith.constant 0 : index
    %24 = vector.load %arg12[%c7, %c0_12] : memref<16x128xf32, #tpu.memory_space<vmem>>, vector<8x128xf32>
    %25 = vector.extract_strided_slice %11 {offsets = [2, 0], sizes = [1, 128], strides = [1, 1]} : vector<4x128xf32> to vector<1x128xf32>
    %26 = vector.broadcast %25 : vector<1x128xf32> to vector<8x128xf32>
    %27 = arith.mulf %24, %26 : vector<8x128xf32>
    %28 = arith.addf %23, %27 : vector<8x128xf32>
    %c8_13 = arith.constant 8 : index
    %c0_14 = arith.constant 0 : index
    %29 = vector.load %arg12[%c8_13, %c0_14] : memref<16x128xf32, #tpu.memory_space<vmem>>, vector<8x128xf32>
    %30 = vector.extract_strided_slice %11 {offsets = [3, 0], sizes = [1, 128], strides = [1, 1]} : vector<4x128xf32> to vector<1x128xf32>
    %31 = vector.broadcast %30 : vector<1x128xf32> to vector<8x128xf32>
    %32 = arith.mulf %29, %31 : vector<8x128xf32>
    %33 = arith.addf %28, %32 : vector<8x128xf32>
    %cst_15 = arith.constant 0.000000e+00 : f32
    %34 = vector.broadcast %cst_15 : f32 to vector<8x128xf32>
    %35 = arith.subf %34, %33 : vector<8x128xf32>
    %36 = math.exp %35 : vector<8x128xf32>
    %cst_16 = arith.constant 1.000000e+00 : f32
    %37 = vector.broadcast %cst_16 : f32 to vector<8x128xf32>
    %38 = arith.addf %37, %36 : vector<8x128xf32>
    %cst_17 = arith.constant 1.000000e+00 : f32
    %39 = vector.broadcast %cst_17 : f32 to vector<8x128xf32>
    %40 = arith.divf %39, %38 : vector<8x128xf32>
    %41 = arith.mulf %33, %40 : vector<8x128xf32>
    %42 = vector.extract_strided_slice %8 {offsets = [5, 0], sizes = [3, 128], strides = [1, 1]} : vector<8x128xf32> to vector<3x128xf32>
    %c5_18 = arith.constant 5 : index
    %c0_19 = arith.constant 0 : index
    %43 = vector.load %arg12[%c5_18, %c0_19] : memref<16x128xf32, #tpu.memory_space<vmem>>, vector<3x128xf32>
    tpu.vector_store %arg12[%c5_18, %c0_19], %42 {strides = array<i32>} : memref<16x128xf32, #tpu.memory_space<vmem>>, vector<3x128xf32>,
    %44 = arith.truncf %41 : vector<8x128xf32> to vector<8x128xbf16>
    %c0_20 = arith.constant 0 : index
    %c0_21 = arith.constant 0 : index
    %45 = vector.load %arg6[%c0_20, %c0_21] : memref<128x160xbf16, #tpu.memory_space<vmem>>, vector<128x160xbf16>
    %cst_22 = arith.constant dense<0.000000e+00> : vector<8x160xf32>
    %46 = tpu.matmul %44, %45, %cst_22 {dimension_numbers = #tpu.dot_dimension_numbers<[1], [0], [0], [1], [0, 0, 1, 1], [], []>} : vector<8x128xbf16>, vector<128x160xbf16>, vector<8x160xf32> -> vector<8x160xf32>
    %47 = vector.extract_strided_slice %46 {offsets = [0, 0], sizes = [8, 128], strides = [1, 1]} : vector<8x160xf32> to vector<8x128xf32>
    %c0_23 = arith.constant 0 : index
    %c0_24 = arith.constant 0 : index
    %48 = vector.load %arg7[%c0_23, %c0_24] : memref<1x128xf32, #tpu.memory_space<vmem>>, vector<1x128xf32>
    %49 = vector.broadcast %48 : vector<1x128xf32> to vector<8x128xf32>
    %50 = arith.addf %47, %49 : vector<8x128xf32>
    %cst_25 = arith.constant 0.000000e+00 : f32
    %51 = vector.broadcast %cst_25 : f32 to vector<8x128xf32>
    %52 = arith.maximumf %50, %51 : vector<8x128xf32>
    %53 = math.absf %50 : vector<8x128xf32>
    %cst_26 = arith.constant 0.000000e+00 : f32
    %54 = vector.broadcast %cst_26 : f32 to vector<8x128xf32>
    %55 = arith.subf %54, %53 : vector<8x128xf32>
    %56 = math.exp %55 : vector<8x128xf32>
    %cst_27 = arith.constant 1.000000e+00 : f32
    %57 = vector.broadcast %cst_27 : f32 to vector<8x128xf32>
    %58 = arith.addf %57, %56 : vector<8x128xf32>
    %59 = math.log %58 : vector<8x128xf32>
    %60 = arith.addf %52, %59 : vector<8x128xf32>
    %61 = vector.extract_strided_slice %46 {offsets = [0, 128], sizes = [8, 16], strides = [1, 1]} : vector<8x160xf32> to vector<8x16xf32>
    %62 = vector.extract_strided_slice %46 {offsets = [0, 144], sizes = [8, 16], strides = [1, 1]} : vector<8x160xf32> to vector<8x16xf32>
    %c0_28 = arith.constant 0 : index
    %c0_29 = arith.constant 0 : index
    %63 = vector.load %arg8[%c0_28, %c0_29] : memref<16x128xf32, #tpu.memory_space<vmem>>, vector<16x128xf32>
    %64 = arith.mulf %60, %41 : vector<8x128xf32>
    %65 = vector.extract_strided_slice %63 {offsets = [0, 0], sizes = [1, 128], strides = [1, 1]} : vector<16x128xf32> to vector<1x128xf32>
    %66 = vector.broadcast %65 : vector<1x128xf32> to vector<8x128xf32>
    %67 = arith.mulf %60, %66 : vector<8x128xf32>
    %68 = math.exp %67 : vector<8x128xf32>
    %c0_30 = arith.constant 0 : index
    %c0_31 = arith.constant 0 : index
    %69 = vector.load %arg13[%c0_30, %c0_31] : memref<128x128xf32, #tpu.memory_space<vmem>>, vector<8x128xf32>
    tpu.vector_store %arg13[%c0_30, %c0_31], %68 {strides = array<i32>} : memref<128x128xf32, #tpu.memory_space<vmem>>, vector<8x128xf32>,
    %70 = vector.extract_strided_slice %61 {offsets = [0, 0], sizes = [8, 1], strides = [1, 1]} : vector<8x16xf32> to vector<8x1xf32>
    %71 = vector.broadcast %70 : vector<8x1xf32> to vector<8x128xf32>
    %72 = arith.mulf %71, %64 : vector<8x128xf32>
    %c0_32 = arith.constant 0 : index
    %c0_33 = arith.constant 0 : index
    %73 = vector.load %arg14[%c0_32, %c0_33] : memref<128x128xf32, #tpu.memory_space<vmem>>, vector<8x128xf32>
    tpu.vector_store %arg14[%c0_32, %c0_33], %72 {strides = array<i32>} : memref<128x128xf32, #tpu.memory_space<vmem>>, vector<8x128xf32>,
    %74 = vector.extract_strided_slice %63 {offsets = [1, 0], sizes = [1, 128], strides = [1, 1]} : vector<16x128xf32> to vector<1x128xf32>
    %75 = vector.broadcast %74 : vector<1x128xf32> to vector<8x128xf32>
    %76 = arith.mulf %60, %75 : vector<8x128xf32>
    %77 = math.exp %76 : vector<8x128xf32>
    %c8_34 = arith.constant 8 : index
    %c0_35 = arith.constant 0 : index
    %78 = vector.load %arg13[%c8_34, %c0_35] : memref<128x128xf32, #tpu.memory_space<vmem>>, vector<8x128xf32>
    tpu.vector_store %arg13[%c8_34, %c0_35], %77 {strides = array<i32>} : memref<128x128xf32, #tpu.memory_space<vmem>>, vector<8x128xf32>,
    %79 = vector.extract_strided_slice %61 {offsets = [0, 1], sizes = [8, 1], strides = [1, 1]} : vector<8x16xf32> to vector<8x1xf32>
    %80 = vector.broadcast %79 : vector<8x1xf32> to vector<8x128xf32>
    %81 = arith.mulf %80, %64 : vector<8x128xf32>
    %c8_36 = arith.constant 8 : index
    %c0_37 = arith.constant 0 : index
    %82 = vector.load %arg14[%c8_36, %c0_37] : memref<128x128xf32, #tpu.memory_space<vmem>>, vector<8x128xf32>
    tpu.vector_store %arg14[%c8_36, %c0_37], %81 {strides = array<i32>} : memref<128x128xf32, #tpu.memory_space<vmem>>, vector<8x128xf32>,
    %83 = vector.extract_strided_slice %63 {offsets = [2, 0], sizes = [1, 128], strides = [1, 1]} : vector<16x128xf32> to vector<1x128xf32>
    %84 = vector.broadcast %83 : vector<1x128xf32> to vector<8x128xf32>
    %85 = arith.mulf %60, %84 : vector<8x128xf32>
    %86 = math.exp %85 : vector<8x128xf32>
    %c16 = arith.constant 16 : index
    %c0_38 = arith.constant 0 : index
    %87 = vector.load %arg13[%c16, %c0_38] : memref<128x128xf32, #tpu.memory_space<vmem>>, vector<8x128xf32>
    tpu.vector_store %arg13[%c16, %c0_38], %86 {strides = array<i32>} : memref<128x128xf32, #tpu.memory_space<vmem>>, vector<8x128xf32>,
    %88 = vector.extract_strided_slice %61 {offsets = [0, 2], sizes = [8, 1], strides = [1, 1]} : vector<8x16xf32> to vector<8x1xf32>
    %89 = vector.broadcast %88 : vector<8x1xf32> to vector<8x128xf32>
    %90 = arith.mulf %89, %64 : vector<8x128xf32>
    %c16_39 = arith.constant 16 : index
    %c0_40 = arith.constant 0 : index
    %91 = vector.load %arg14[%c16_39, %c0_40] : memref<128x128xf32, #tpu.memory_space<vmem>>, vector<8x128xf32>
    tpu.vector_store %arg14[%c16_39, %c0_40], %90 {strides = array<i32>} : memref<128x128xf32, #tpu.memory_space<vmem>>, vector<8x128xf32>,
    %92 = vector.extract_strided_slice %63 {offsets = [3, 0], sizes = [1, 128], strides = [1, 1]} : vector<16x128xf32> to vector<1x128xf32>
    %93 = vector.broadcast %92 : vector<1x128xf32> to vector<8x128xf32>
    %94 = arith.mulf %60, %93 : vector<8x128xf32>
    %95 = math.exp %94 : vector<8x128xf32>
    %c24 = arith.constant 24 : index
    %c0_41 = arith.constant 0 : index
    %96 = vector.load %arg13[%c24, %c0_41] : memref<128x128xf32, #tpu.memory_space<vmem>>, vector<8x128xf32>
    tpu.vector_store %arg13[%c24, %c0_41], %95 {strides = array<i32>} : memref<128x128xf32, #tpu.memory_space<vmem>>, vector<8x128xf32>,
    %97 = vector.extract_strided_slice %61 {offsets = [0, 3], sizes = [8, 1], strides = [1, 1]} : vector<8x16xf32> to vector<8x1xf32>
    %98 = vector.broadcast %97 : vector<8x1xf32> to vector<8x128xf32>
    %99 = arith.mulf %98, %64 : vector<8x128xf32>
    %c24_42 = arith.constant 24 : index
    %c0_43 = arith.constant 0 : index
    %100 = vector.load %arg14[%c24_42, %c0_43] : memref<128x128xf32, #tpu.memory_space<vmem>>, vector<8x128xf32>
    tpu.vector_store %arg14[%c24_42, %c0_43], %99 {strides = array<i32>} : memref<128x128xf32, #tpu.memory_space<vmem>>, vector<8x128xf32>,
    %101 = vector.extract_strided_slice %63 {offsets = [4, 0], sizes = [1, 128], strides = [1, 1]} : vector<16x128xf32> to vector<1x128xf32>
    %102 = vector.broadcast %101 : vector<1x128xf32> to vector<8x128xf32>
    %103 = arith.mulf %60, %102 : vector<8x128xf32>
    %104 = math.exp %103 : vector<8x128xf32>
    %c32 = arith.constant 32 : index
    %c0_44 = arith.constant 0 : index
    %105 = vector.load %arg13[%c32, %c0_44] : memref<128x128xf32, #tpu.memory_space<vmem>>, vector<8x128xf32>
    tpu.vector_store %arg13[%c32, %c0_44], %104 {strides = array<i32>} : memref<128x128xf32, #tpu.memory_space<vmem>>, vector<8x128xf32>,
    %106 = vector.extract_strided_slice %61 {offsets = [0, 4], sizes = [8, 1], strides = [1, 1]} : vector<8x16xf32> to vector<8x1xf32>
    %107 = vector.broadcast %106 : vector<8x1xf32> to vector<8x128xf32>
    %108 = arith.mulf %107, %64 : vector<8x128xf32>
    %c32_45 = arith.constant 32 : index
    %c0_46 = arith.constant 0 : index
    %109 = vector.load %arg14[%c32_45, %c0_46] : memref<128x128xf32, #tpu.memory_space<vmem>>, vector<8x128xf32>
    tpu.vector_store %arg14[%c32_45, %c0_46], %108 {strides = array<i32>} : memref<128x128xf32, #tpu.memory_space<vmem>>, vector<8x128xf32>,
    %110 = vector.extract_strided_slice %63 {offsets = [5, 0], sizes = [1, 128], strides = [1, 1]} : vector<16x128xf32> to vector<1x128xf32>
    %111 = vector.broadcast %110 : vector<1x128xf32> to vector<8x128xf32>
    %112 = arith.mulf %60, %111 : vector<8x128xf32>
    %113 = math.exp %112 : vector<8x128xf32>
    %c40 = arith.constant 40 : index
    %c0_47 = arith.constant 0 : index
    %114 = vector.load %arg13[%c40, %c0_47] : memref<128x128xf32, #tpu.memory_space<vmem>>, vector<8x128xf32>
    tpu.vector_store %arg13[%c40, %c0_47], %113 {strides = array<i32>} : memref<128x128xf32, #tpu.memory_space<vmem>>, vector<8x128xf32>,
    %115 = vector.extract_strided_slice %61 {offsets = [0, 5], sizes = [8, 1], strides = [1, 1]} : vector<8x16xf32> to vector<8x1xf32>
    %116 = vector.broadcast %115 : vector<8x1xf32> to vector<8x128xf32>
    %117 = arith.mulf %116, %64 : vector<8x128xf32>
    %c40_48 = arith.constant 40 : index
    %c0_49 = arith.constant 0 : index
    %118 = vector.load %arg14[%c40_48, %c0_49] : memref<128x128xf32, #tpu.memory_space<vmem>>, vector<8x128xf32>
    tpu.vector_store %arg14[%c40_48, %c0_49], %117 {strides = array<i32>} : memref<128x128xf32, #tpu.memory_space<vmem>>, vector<8x128xf32>,
    %119 = vector.extract_strided_slice %63 {offsets = [6, 0], sizes = [1, 128], strides = [1, 1]} : vector<16x128xf32> to vector<1x128xf32>
    %120 = vector.broadcast %119 : vector<1x128xf32> to vector<8x128xf32>
    %121 = arith.mulf %60, %120 : vector<8x128xf32>
    %122 = math.exp %121 : vector<8x128xf32>
    %c48 = arith.constant 48 : index
    %c0_50 = arith.constant 0 : index
    %123 = vector.load %arg13[%c48, %c0_50] : memref<128x128xf32, #tpu.memory_space<vmem>>, vector<8x128xf32>
    tpu.vector_store %arg13[%c48, %c0_50], %122 {strides = array<i32>} : memref<128x128xf32, #tpu.memory_space<vmem>>, vector<8x128xf32>,
    %124 = vector.extract_strided_slice %61 {offsets = [0, 6], sizes = [8, 1], strides = [1, 1]} : vector<8x16xf32> to vector<8x1xf32>
    %125 = vector.broadcast %124 : vector<8x1xf32> to vector<8x128xf32>
    %126 = arith.mulf %125, %64 : vector<8x128xf32>
    %c48_51 = arith.constant 48 : index
    %c0_52 = arith.constant 0 : index
    %127 = vector.load %arg14[%c48_51, %c0_52] : memref<128x128xf32, #tpu.memory_space<vmem>>, vector<8x128xf32>
    tpu.vector_store %arg14[%c48_51, %c0_52], %126 {strides = array<i32>} : memref<128x128xf32, #tpu.memory_space<vmem>>, vector<8x128xf32>,
    %128 = vector.extract_strided_slice %63 {offsets = [7, 0], sizes = [1, 128], strides = [1, 1]} : vector<16x128xf32> to vector<1x128xf32>
    %129 = vector.broadcast %128 : vector<1x128xf32> to vector<8x128xf32>
    %130 = arith.mulf %60, %129 : vector<8x128xf32>
    %131 = math.exp %130 : vector<8x128xf32>
    %c56 = arith.constant 56 : index
    %c0_53 = arith.constant 0 : index
    %132 = vector.load %arg13[%c56, %c0_53] : memref<128x128xf32, #tpu.memory_space<vmem>>, vector<8x128xf32>
    tpu.vector_store %arg13[%c56, %c0_53], %131 {strides = array<i32>} : memref<128x128xf32, #tpu.memory_space<vmem>>, vector<8x128xf32>,
    %133 = vector.extract_strided_slice %61 {offsets = [0, 7], sizes = [8, 1], strides = [1, 1]} : vector<8x16xf32> to vector<8x1xf32>
    %134 = vector.broadcast %133 : vector<8x1xf32> to vector<8x128xf32>
    %135 = arith.mulf %134, %64 : vector<8x128xf32>
    %c56_54 = arith.constant 56 : index
    %c0_55 = arith.constant 0 : index
    %136 = vector.load %arg14[%c56_54, %c0_55] : memref<128x128xf32, #tpu.memory_space<vmem>>, vector<8x128xf32>
    tpu.vector_store %arg14[%c56_54, %c0_55], %135 {strides = array<i32>} : memref<128x128xf32, #tpu.memory_space<vmem>>, vector<8x128xf32>,
    %137 = vector.extract_strided_slice %63 {offsets = [8, 0], sizes = [1, 128], strides = [1, 1]} : vector<16x128xf32> to vector<1x128xf32>
    %138 = vector.broadcast %137 : vector<1x128xf32> to vector<8x128xf32>
    %139 = arith.mulf %60, %138 : vector<8x128xf32>
    %140 = math.exp %139 : vector<8x128xf32>
    %c64 = arith.constant 64 : index
    %c0_56 = arith.constant 0 : index
    %141 = vector.load %arg13[%c64, %c0_56] : memref<128x128xf32, #tpu.memory_space<vmem>>, vector<8x128xf32>
    tpu.vector_store %arg13[%c64, %c0_56], %140 {strides = array<i32>} : memref<128x128xf32, #tpu.memory_space<vmem>>, vector<8x128xf32>,
    %142 = vector.extract_strided_slice %61 {offsets = [0, 8], sizes = [8, 1], strides = [1, 1]} : vector<8x16xf32> to vector<8x1xf32>
    %143 = vector.broadcast %142 : vector<8x1xf32> to vector<8x128xf32>
    %144 = arith.mulf %143, %64 : vector<8x128xf32>
    %c64_57 = arith.constant 64 : index
    %c0_58 = arith.constant 0 : index
    %145 = vector.load %arg14[%c64_57, %c0_58] : memref<128x128xf32, #tpu.memory_space<vmem>>, vector<8x128xf32>
    tpu.vector_store %arg14[%c64_57, %c0_58], %144 {strides = array<i32>} : memref<128x128xf32, #tpu.memory_space<vmem>>, vector<8x128xf32>,
    %146 = vector.extract_strided_slice %63 {offsets = [9, 0], sizes = [1, 128], strides = [1, 1]} : vector<16x128xf32> to vector<1x128xf32>
    %147 = vector.broadcast %146 : vector<1x128xf32> to vector<8x128xf32>
    %148 = arith.mulf %60, %147 : vector<8x128xf32>
    %149 = math.exp %148 : vector<8x128xf32>
    %c72 = arith.constant 72 : index
    %c0_59 = arith.constant 0 : index
    %150 = vector.load %arg13[%c72, %c0_59] : memref<128x128xf32, #tpu.memory_space<vmem>>, vector<8x128xf32>
    tpu.vector_store %arg13[%c72, %c0_59], %149 {strides = array<i32>} : memref<128x128xf32, #tpu.memory_space<vmem>>, vector<8x128xf32>,
    %151 = vector.extract_strided_slice %61 {offsets = [0, 9], sizes = [8, 1], strides = [1, 1]} : vector<8x16xf32> to vector<8x1xf32>
    %152 = vector.broadcast %151 : vector<8x1xf32> to vector<8x128xf32>
    %153 = arith.mulf %152, %64 : vector<8x128xf32>
    %c72_60 = arith.constant 72 : index
    %c0_61 = arith.constant 0 : index
    %154 = vector.load %arg14[%c72_60, %c0_61] : memref<128x128xf32, #tpu.memory_space<vmem>>, vector<8x128xf32>
    tpu.vector_store %arg14[%c72_60, %c0_61], %153 {strides = array<i32>} : memref<128x128xf32, #tpu.memory_space<vmem>>, vector<8x128xf32>,
    %155 = vector.extract_strided_slice %63 {offsets = [10, 0], sizes = [1, 128], strides = [1, 1]} : vector<16x128xf32> to vector<1x128xf32>
    %156 = vector.broadcast %155 : vector<1x128xf32> to vector<8x128xf32>
    %157 = arith.mulf %60, %156 : vector<8x128xf32>
    %158 = math.exp %157 : vector<8x128xf32>
    %c80 = arith.constant 80 : index
    %c0_62 = arith.constant 0 : index
    %159 = vector.load %arg13[%c80, %c0_62] : memref<128x128xf32, #tpu.memory_space<vmem>>, vector<8x128xf32>
    tpu.vector_store %arg13[%c80, %c0_62], %158 {strides = array<i32>} : memref<128x128xf32, #tpu.memory_space<vmem>>, vector<8x128xf32>,
    %160 = vector.extract_strided_slice %61 {offsets = [0, 10], sizes = [8, 1], strides = [1, 1]} : vector<8x16xf32> to vector<8x1xf32>
    %161 = vector.broadcast %160 : vector<8x1xf32> to vector<8x128xf32>
    %162 = arith.mulf %161, %64 : vector<8x128xf32>
    %c80_63 = arith.constant 80 : index
    %c0_64 = arith.constant 0 : index
    %163 = vector.load %arg14[%c80_63, %c0_64] : memref<128x128xf32, #tpu.memory_space<vmem>>, vector<8x128xf32>
    tpu.vector_store %arg14[%c80_63, %c0_64], %162 {strides = array<i32>} : memref<128x128xf32, #tpu.memory_space<vmem>>, vector<8x128xf32>,
    %164 = vector.extract_strided_slice %63 {offsets = [11, 0], sizes = [1, 128], strides = [1, 1]} : vector<16x128xf32> to vector<1x128xf32>
    %165 = vector.broadcast %164 : vector<1x128xf32> to vector<8x128xf32>
    %166 = arith.mulf %60, %165 : vector<8x128xf32>
    %167 = math.exp %166 : vector<8x128xf32>
    %c88 = arith.constant 88 : index
    %c0_65 = arith.constant 0 : index
    %168 = vector.load %arg13[%c88, %c0_65] : memref<128x128xf32, #tpu.memory_space<vmem>>, vector<8x128xf32>
    tpu.vector_store %arg13[%c88, %c0_65], %167 {strides = array<i32>} : memref<128x128xf32, #tpu.memory_space<vmem>>, vector<8x128xf32>,
    %169 = vector.extract_strided_slice %61 {offsets = [0, 11], sizes = [8, 1], strides = [1, 1]} : vector<8x16xf32> to vector<8x1xf32>
    %170 = vector.broadcast %169 : vector<8x1xf32> to vector<8x128xf32>
    %171 = arith.mulf %170, %64 : vector<8x128xf32>
    %c88_66 = arith.constant 88 : index
    %c0_67 = arith.constant 0 : index
    %172 = vector.load %arg14[%c88_66, %c0_67] : memref<128x128xf32, #tpu.memory_space<vmem>>, vector<8x128xf32>
    tpu.vector_store %arg14[%c88_66, %c0_67], %171 {strides = array<i32>} : memref<128x128xf32, #tpu.memory_space<vmem>>, vector<8x128xf32>,
    %173 = vector.extract_strided_slice %63 {offsets = [12, 0], sizes = [1, 128], strides = [1, 1]} : vector<16x128xf32> to vector<1x128xf32>
    %174 = vector.broadcast %173 : vector<1x128xf32> to vector<8x128xf32>
    %175 = arith.mulf %60, %174 : vector<8x128xf32>
    %176 = math.exp %175 : vector<8x128xf32>
    %c96 = arith.constant 96 : index
    %c0_68 = arith.constant 0 : index
    %177 = vector.load %arg13[%c96, %c0_68] : memref<128x128xf32, #tpu.memory_space<vmem>>, vector<8x128xf32>
    tpu.vector_store %arg13[%c96, %c0_68], %176 {strides = array<i32>} : memref<128x128xf32, #tpu.memory_space<vmem>>, vector<8x128xf32>,
    %178 = vector.extract_strided_slice %61 {offsets = [0, 12], sizes = [8, 1], strides = [1, 1]} : vector<8x16xf32> to vector<8x1xf32>
    %179 = vector.broadcast %178 : vector<8x1xf32> to vector<8x128xf32>
    %180 = arith.mulf %179, %64 : vector<8x128xf32>
    %c96_69 = arith.constant 96 : index
    %c0_70 = arith.constant 0 : index
    %181 = vector.load %arg14[%c96_69, %c0_70] : memref<128x128xf32, #tpu.memory_space<vmem>>, vector<8x128xf32>
    tpu.vector_store %arg14[%c96_69, %c0_70], %180 {strides = array<i32>} : memref<128x128xf32, #tpu.memory_space<vmem>>, vector<8x128xf32>,
    %182 = vector.extract_strided_slice %63 {offsets = [13, 0], sizes = [1, 128], strides = [1, 1]} : vector<16x128xf32> to vector<1x128xf32>
    %183 = vector.broadcast %182 : vector<1x128xf32> to vector<8x128xf32>
    %184 = arith.mulf %60, %183 : vector<8x128xf32>
    %185 = math.exp %184 : vector<8x128xf32>
    %c104 = arith.constant 104 : index
    %c0_71 = arith.constant 0 : index
    %186 = vector.load %arg13[%c104, %c0_71] : memref<128x128xf32, #tpu.memory_space<vmem>>, vector<8x128xf32>
    tpu.vector_store %arg13[%c104, %c0_71], %185 {strides = array<i32>} : memref<128x128xf32, #tpu.memory_space<vmem>>, vector<8x128xf32>,
    %187 = vector.extract_strided_slice %61 {offsets = [0, 13], sizes = [8, 1], strides = [1, 1]} : vector<8x16xf32> to vector<8x1xf32>
    %188 = vector.broadcast %187 : vector<8x1xf32> to vector<8x128xf32>
    %189 = arith.mulf %188, %64 : vector<8x128xf32>
    %c104_72 = arith.constant 104 : index
    %c0_73 = arith.constant 0 : index
    %190 = vector.load %arg14[%c104_72, %c0_73] : memref<128x128xf32, #tpu.memory_space<vmem>>, vector<8x128xf32>
    tpu.vector_store %arg14[%c104_72, %c0_73], %189 {strides = array<i32>} : memref<128x128xf32, #tpu.memory_space<vmem>>, vector<8x128xf32>,
    %191 = vector.extract_strided_slice %63 {offsets = [14, 0], sizes = [1, 128], strides = [1, 1]} : vector<16x128xf32> to vector<1x128xf32>
    %192 = vector.broadcast %191 : vector<1x128xf32> to vector<8x128xf32>
    %193 = arith.mulf %60, %192 : vector<8x128xf32>
    %194 = math.exp %193 : vector<8x128xf32>
    %c112 = arith.constant 112 : index
    %c0_74 = arith.constant 0 : index
    %195 = vector.load %arg13[%c112, %c0_74] : memref<128x128xf32, #tpu.memory_space<vmem>>, vector<8x128xf32>
    tpu.vector_store %arg13[%c112, %c0_74], %194 {strides = array<i32>} : memref<128x128xf32, #tpu.memory_space<vmem>>, vector<8x128xf32>,
    %196 = vector.extract_strided_slice %61 {offsets = [0, 14], sizes = [8, 1], strides = [1, 1]} : vector<8x16xf32> to vector<8x1xf32>
    %197 = vector.broadcast %196 : vector<8x1xf32> to vector<8x128xf32>
    %198 = arith.mulf %197, %64 : vector<8x128xf32>
    %c112_75 = arith.constant 112 : index
    %c0_76 = arith.constant 0 : index
    %199 = vector.load %arg14[%c112_75, %c0_76] : memref<128x128xf32, #tpu.memory_space<vmem>>, vector<8x128xf32>
    tpu.vector_store %arg14[%c112_75, %c0_76], %198 {strides = array<i32>} : memref<128x128xf32, #tpu.memory_space<vmem>>, vector<8x128xf32>,
    %200 = vector.extract_strided_slice %63 {offsets = [15, 0], sizes = [1, 128], strides = [1, 1]} : vector<16x128xf32> to vector<1x128xf32>
    %201 = vector.broadcast %200 : vector<1x128xf32> to vector<8x128xf32>
    %202 = arith.mulf %60, %201 : vector<8x128xf32>
    %203 = math.exp %202 : vector<8x128xf32>
    %c120 = arith.constant 120 : index
    %c0_77 = arith.constant 0 : index
    %204 = vector.load %arg13[%c120, %c0_77] : memref<128x128xf32, #tpu.memory_space<vmem>>, vector<8x128xf32>
    tpu.vector_store %arg13[%c120, %c0_77], %203 {strides = array<i32>} : memref<128x128xf32, #tpu.memory_space<vmem>>, vector<8x128xf32>,
    %205 = vector.extract_strided_slice %61 {offsets = [0, 15], sizes = [8, 1], strides = [1, 1]} : vector<8x16xf32> to vector<8x1xf32>
    %206 = vector.broadcast %205 : vector<8x1xf32> to vector<8x128xf32>
    %207 = arith.mulf %206, %64 : vector<8x128xf32>
    %c120_78 = arith.constant 120 : index
    %c0_79 = arith.constant 0 : index
    %208 = vector.load %arg14[%c120_78, %c0_79] : memref<128x128xf32, #tpu.memory_space<vmem>>, vector<8x128xf32>
    tpu.vector_store %arg14[%c120_78, %c0_79], %207 {strides = array<i32>} : memref<128x128xf32, #tpu.memory_space<vmem>>, vector<8x128xf32>,
    %c0_80 = arith.constant 0 : index
    %c0_81 = arith.constant 0 : index
    %209 = vector.load %arg16[%c0_80, %c0_81] : memref<16x128xf32, #tpu.memory_space<vmem>>, vector<16x128xf32>
    %c0_i32_82 = arith.constant 0 : i32
    %c8_i32 = arith.constant 8 : i32
    %210 = arith.addi %c0_i32_82, %c8_i32 : i32
    %c1_i32 = arith.constant 1 : i32
    %211 = scf.for %arg17 = %c0_i32_82 to %210 step %c1_i32 iter_args(%arg18 = %209) -> (vector<16x128xf32>)  : i32 {
      %311 = arith.index_cast %arg17 : i32 to index
      %c0_118 = arith.constant 0 : index
      %312 = tpu.strided_load %arg13[%311, %c0_118] {strides = array<i32: 8, 1>} : memref<128x128xf32, #tpu.memory_space<vmem>>, vector<16x128xf32>
      %313 = arith.mulf %312, %arg18 : vector<16x128xf32>
      %314 = arith.index_cast %arg17 : i32 to index
      %c0_119 = arith.constant 0 : index
      %315 = tpu.strided_load %arg14[%314, %c0_119] {strides = array<i32: 8, 1>} : memref<128x128xf32, #tpu.memory_space<vmem>>, vector<16x128xf32>
      %316 = arith.addf %313, %315 : vector<16x128xf32>
      %c16_i32 = arith.constant 16 : i32
      %317 = arith.muli %arg17, %c16_i32 : i32
      %318 = arith.index_cast %317 : i32 to index
      %c0_120 = arith.constant 0 : index
      %319 = vector.load %arg15[%318, %c0_120] : memref<128x128xf32, #tpu.memory_space<vmem>>, vector<16x128xf32>
      tpu.vector_store %arg15[%318, %c0_120], %316 {strides = array<i32>} : memref<128x128xf32, #tpu.memory_space<vmem>>, vector<16x128xf32>,
      scf.yield %316 : vector<16x128xf32>
    }
    %c8_i32_83 = arith.constant 8 : i32
    %c0_84 = arith.constant 0 : index
    %c0_85 = arith.constant 0 : index
    %212 = vector.load %arg16[%c0_84, %c0_85] : memref<16x128xf32, #tpu.memory_space<vmem>>, vector<16x128xf32>
    tpu.vector_store %arg16[%c0_84, %c0_85], %211 {strides = array<i32>} : memref<16x128xf32, #tpu.memory_space<vmem>>, vector<16x128xf32>,
    %c0_86 = arith.constant 0 : index
    %c0_87 = arith.constant 0 : index
    %213 = vector.load %arg9[%c0_86, %c0_87] : memref<1x128xf32, #tpu.memory_space<vmem>>, vector<1x128xf32>
    %214 = vector.broadcast %213 : vector<1x128xf32> to vector<8x128xf32>
    %215 = arith.mulf %214, %41 : vector<8x128xf32>
    %216 = vector.extract_strided_slice %62 {offsets = [0, 0], sizes = [8, 1], strides = [1, 1]} : vector<8x16xf32> to vector<8x1xf32>
    %c0_88 = arith.constant 0 : index
    %c0_89 = arith.constant 0 : index
    %217 = tpu.strided_load %arg15[%c0_88, %c0_89] {strides = array<i32: 16, 1>} : memref<128x128xf32, #tpu.memory_space<vmem>>, vector<8x128xf32>
    %218 = vector.broadcast %216 : vector<8x1xf32> to vector<8x128xf32>
    %219 = arith.mulf %218, %217 : vector<8x128xf32>
    %220 = arith.addf %215, %219 : vector<8x128xf32>
    %221 = vector.extract_strided_slice %62 {offsets = [0, 1], sizes = [8, 1], strides = [1, 1]} : vector<8x16xf32> to vector<8x1xf32>
    %c1 = arith.constant 1 : index
    %c0_90 = arith.constant 0 : index
    %222 = tpu.strided_load %arg15[%c1, %c0_90] {strides = array<i32: 16, 1>} : memref<128x128xf32, #tpu.memory_space<vmem>>, vector<8x128xf32>
    %223 = vector.broadcast %221 : vector<8x1xf32> to vector<8x128xf32>
    %224 = arith.mulf %223, %222 : vector<8x128xf32>
    %225 = arith.addf %220, %224 : vector<8x128xf32>
    %226 = vector.extract_strided_slice %62 {offsets = [0, 2], sizes = [8, 1], strides = [1, 1]} : vector<8x16xf32> to vector<8x1xf32>
    %c2 = arith.constant 2 : index
    %c0_91 = arith.constant 0 : index
    %227 = tpu.strided_load %arg15[%c2, %c0_91] {strides = array<i32: 16, 1>} : memref<128x128xf32, #tpu.memory_space<vmem>>, vector<8x128xf32>
    %228 = vector.broadcast %226 : vector<8x1xf32> to vector<8x128xf32>
    %229 = arith.mulf %228, %227 : vector<8x128xf32>
    %230 = arith.addf %225, %229 : vector<8x128xf32>
    %231 = vector.extract_strided_slice %62 {offsets = [0, 3], sizes = [8, 1], strides = [1, 1]} : vector<8x16xf32> to vector<8x1xf32>
    %c3 = arith.constant 3 : index
    %c0_92 = arith.constant 0 : index
    %232 = tpu.strided_load %arg15[%c3, %c0_92] {strides = array<i32: 16, 1>} : memref<128x128xf32, #tpu.memory_space<vmem>>, vector<8x128xf32>
    %233 = vector.broadcast %231 : vector<8x1xf32> to vector<8x128xf32>
    %234 = arith.mulf %233, %232 : vector<8x128xf32>
    %235 = arith.addf %230, %234 : vector<8x128xf32>
    %236 = vector.extract_strided_slice %62 {offsets = [0, 4], sizes = [8, 1], strides = [1, 1]} : vector<8x16xf32> to vector<8x1xf32>
    %c4 = arith.constant 4 : index
    %c0_93 = arith.constant 0 : index
    %237 = tpu.strided_load %arg15[%c4, %c0_93] {strides = array<i32: 16, 1>} : memref<128x128xf32, #tpu.memory_space<vmem>>, vector<8x128xf32>
    %238 = vector.broadcast %236 : vector<8x1xf32> to vector<8x128xf32>
    %239 = arith.mulf %238, %237 : vector<8x128xf32>
    %240 = arith.addf %235, %239 : vector<8x128xf32>
    %241 = vector.extract_strided_slice %62 {offsets = [0, 5], sizes = [8, 1], strides = [1, 1]} : vector<8x16xf32> to vector<8x1xf32>
    %c5_94 = arith.constant 5 : index
    %c0_95 = arith.constant 0 : index
    %242 = tpu.strided_load %arg15[%c5_94, %c0_95] {strides = array<i32: 16, 1>} : memref<128x128xf32, #tpu.memory_space<vmem>>, vector<8x128xf32>
    %243 = vector.broadcast %241 : vector<8x1xf32> to vector<8x128xf32>
    %244 = arith.mulf %243, %242 : vector<8x128xf32>
    %245 = arith.addf %240, %244 : vector<8x128xf32>
    %246 = vector.extract_strided_slice %62 {offsets = [0, 6], sizes = [8, 1], strides = [1, 1]} : vector<8x16xf32> to vector<8x1xf32>
    %c6_96 = arith.constant 6 : index
    %c0_97 = arith.constant 0 : index
    %247 = tpu.strided_load %arg15[%c6_96, %c0_97] {strides = array<i32: 16, 1>} : memref<128x128xf32, #tpu.memory_space<vmem>>, vector<8x128xf32>
    %248 = vector.broadcast %246 : vector<8x1xf32> to vector<8x128xf32>
    %249 = arith.mulf %248, %247 : vector<8x128xf32>
    %250 = arith.addf %245, %249 : vector<8x128xf32>
    %251 = vector.extract_strided_slice %62 {offsets = [0, 7], sizes = [8, 1], strides = [1, 1]} : vector<8x16xf32> to vector<8x1xf32>
    %c7_98 = arith.constant 7 : index
    %c0_99 = arith.constant 0 : index
    %252 = tpu.strided_load %arg15[%c7_98, %c0_99] {strides = array<i32: 16, 1>} : memref<128x128xf32, #tpu.memory_space<vmem>>, vector<8x128xf32>
    %253 = vector.broadcast %251 : vector<8x1xf32> to vector<8x128xf32>
    %254 = arith.mulf %253, %252 : vector<8x128xf32>
    %255 = arith.addf %250, %254 : vector<8x128xf32>
    %256 = vector.extract_strided_slice %62 {offsets = [0, 8], sizes = [8, 1], strides = [1, 1]} : vector<8x16xf32> to vector<8x1xf32>
    %c8_100 = arith.constant 8 : index
    %c0_101 = arith.constant 0 : index
    %257 = tpu.strided_load %arg15[%c8_100, %c0_101] {strides = array<i32: 16, 1>} : memref<128x128xf32, #tpu.memory_space<vmem>>, vector<8x128xf32>
    %258 = vector.broadcast %256 : vector<8x1xf32> to vector<8x128xf32>
    %259 = arith.mulf %258, %257 : vector<8x128xf32>
    %260 = arith.addf %255, %259 : vector<8x128xf32>
    %261 = vector.extract_strided_slice %62 {offsets = [0, 9], sizes = [8, 1], strides = [1, 1]} : vector<8x16xf32> to vector<8x1xf32>
    %c9 = arith.constant 9 : index
    %c0_102 = arith.constant 0 : index
    %262 = tpu.strided_load %arg15[%c9, %c0_102] {strides = array<i32: 16, 1>} : memref<128x128xf32, #tpu.memory_space<vmem>>, vector<8x128xf32>
    %263 = vector.broadcast %261 : vector<8x1xf32> to vector<8x128xf32>
    %264 = arith.mulf %263, %262 : vector<8x128xf32>
    %265 = arith.addf %260, %264 : vector<8x128xf32>
    %266 = vector.extract_strided_slice %62 {offsets = [0, 10], sizes = [8, 1], strides = [1, 1]} : vector<8x16xf32> to vector<8x1xf32>
    %c10 = arith.constant 10 : index
    %c0_103 = arith.constant 0 : index
    %267 = tpu.strided_load %arg15[%c10, %c0_103] {strides = array<i32: 16, 1>} : memref<128x128xf32, #tpu.memory_space<vmem>>, vector<8x128xf32>
    %268 = vector.broadcast %266 : vector<8x1xf32> to vector<8x128xf32>
    %269 = arith.mulf %268, %267 : vector<8x128xf32>
    %270 = arith.addf %265, %269 : vector<8x128xf32>
    %271 = vector.extract_strided_slice %62 {offsets = [0, 11], sizes = [8, 1], strides = [1, 1]} : vector<8x16xf32> to vector<8x1xf32>
    %c11 = arith.constant 11 : index
    %c0_104 = arith.constant 0 : index
    %272 = tpu.strided_load %arg15[%c11, %c0_104] {strides = array<i32: 16, 1>} : memref<128x128xf32, #tpu.memory_space<vmem>>, vector<8x128xf32>
    %273 = vector.broadcast %271 : vector<8x1xf32> to vector<8x128xf32>
    %274 = arith.mulf %273, %272 : vector<8x128xf32>
    %275 = arith.addf %270, %274 : vector<8x128xf32>
    %276 = vector.extract_strided_slice %62 {offsets = [0, 12], sizes = [8, 1], strides = [1, 1]} : vector<8x16xf32> to vector<8x1xf32>
    %c12 = arith.constant 12 : index
    %c0_105 = arith.constant 0 : index
    %277 = tpu.strided_load %arg15[%c12, %c0_105] {strides = array<i32: 16, 1>} : memref<128x128xf32, #tpu.memory_space<vmem>>, vector<8x128xf32>
    %278 = vector.broadcast %276 : vector<8x1xf32> to vector<8x128xf32>
    %279 = arith.mulf %278, %277 : vector<8x128xf32>
    %280 = arith.addf %275, %279 : vector<8x128xf32>
    %281 = vector.extract_strided_slice %62 {offsets = [0, 13], sizes = [8, 1], strides = [1, 1]} : vector<8x16xf32> to vector<8x1xf32>
    %c13 = arith.constant 13 : index
    %c0_106 = arith.constant 0 : index
    %282 = tpu.strided_load %arg15[%c13, %c0_106] {strides = array<i32: 16, 1>} : memref<128x128xf32, #tpu.memory_space<vmem>>, vector<8x128xf32>
    %283 = vector.broadcast %281 : vector<8x1xf32> to vector<8x128xf32>
    %284 = arith.mulf %283, %282 : vector<8x128xf32>
    %285 = arith.addf %280, %284 : vector<8x128xf32>
    %286 = vector.extract_strided_slice %62 {offsets = [0, 14], sizes = [8, 1], strides = [1, 1]} : vector<8x16xf32> to vector<8x1xf32>
    %c14 = arith.constant 14 : index
    %c0_107 = arith.constant 0 : index
    %287 = tpu.strided_load %arg15[%c14, %c0_107] {strides = array<i32: 16, 1>} : memref<128x128xf32, #tpu.memory_space<vmem>>, vector<8x128xf32>
    %288 = vector.broadcast %286 : vector<8x1xf32> to vector<8x128xf32>
    %289 = arith.mulf %288, %287 : vector<8x128xf32>
    %290 = arith.addf %285, %289 : vector<8x128xf32>
    %291 = vector.extract_strided_slice %62 {offsets = [0, 15], sizes = [8, 1], strides = [1, 1]} : vector<8x16xf32> to vector<8x1xf32>
    %c15 = arith.constant 15 : index
    %c0_108 = arith.constant 0 : index
    %292 = tpu.strided_load %arg15[%c15, %c0_108] {strides = array<i32: 16, 1>} : memref<128x128xf32, #tpu.memory_space<vmem>>, vector<8x128xf32>
    %293 = vector.broadcast %291 : vector<8x1xf32> to vector<8x128xf32>
    %294 = arith.mulf %293, %292 : vector<8x128xf32>
    %295 = arith.addf %290, %294 : vector<8x128xf32>
    %cst_109 = arith.constant 0.000000e+00 : f32
    %296 = vector.broadcast %cst_109 : f32 to vector<8x128xf32>
    %297 = arith.subf %296, %9 : vector<8x128xf32>
    %298 = math.exp %297 : vector<8x128xf32>
    %cst_110 = arith.constant 1.000000e+00 : f32
    %299 = vector.broadcast %cst_110 : f32 to vector<8x128xf32>
    %300 = arith.addf %299, %298 : vector<8x128xf32>
    %cst_111 = arith.constant 1.000000e+00 : f32
    %301 = vector.broadcast %cst_111 : f32 to vector<8x128xf32>
    %302 = arith.divf %301, %300 : vector<8x128xf32>
    %303 = arith.mulf %9, %302 : vector<8x128xf32>
    %304 = arith.mulf %295, %303 : vector<8x128xf32>
    %305 = arith.truncf %304 : vector<8x128xf32> to vector<8x128xbf16>
    %c0_112 = arith.constant 0 : index
    %c0_113 = arith.constant 0 : index
    %306 = vector.load %arg10[%c0_112, %c0_113] : memref<128x128xbf16, #tpu.memory_space<vmem>>, vector<128x128xbf16>
    %cst_114 = arith.constant dense<0.000000e+00> : vector<8x128xf32>
    %307 = tpu.matmul %305, %306, %cst_114 {dimension_numbers = #tpu.dot_dimension_numbers<[1], [0], [0], [1], [0, 0, 1, 1], [], []>} : vector<8x128xbf16>, vector<128x128xbf16>, vector<8x128xf32> -> vector<8x128xf32>
    %c0_115 = arith.constant 0 : index
    %c0_116 = arith.constant 0 : index
    %c0_117 = arith.constant 0 : index
    %308 = vector.load %arg11[%c0_115, %c0_116, %c0_117] : memref<1x8x128xf32, #tpu.memory_space<vmem>>, vector<1x8x128xf32>
    %309 = vector.shape_cast %308 : vector<1x8x128xf32> to vector<8x128xf32>
    %310 = vector.shape_cast %307 : vector<8x128xf32> to vector<1x8x128xf32>
    tpu.vector_store %arg11[%c0_115, %c0_116, %c0_117], %310 {strides = array<i32>} : memref<1x8x128xf32, #tpu.memory_space<vmem>>, vector<1x8x128xf32>,
    return
  }
  func.func @transform_0(%arg0: i32, %arg1: i32) -> (i32, i32, i32) {
    %c0_i32 = arith.constant 0 : i32
    %c0_i32_0 = arith.constant 0 : i32
    return %arg0, %arg1, %c0_i32 : i32, i32, i32
  }
  func.func @transform_1(%arg0: i32, %arg1: i32) -> (i32, i32) {
    %c0_i32 = arith.constant 0 : i32
    %c0_i32_0 = arith.constant 0 : i32
    %c0_i32_1 = arith.constant 0 : i32
    return %c0_i32, %c0_i32_0 : i32, i32
  }
  func.func @transform_2(%arg0: i32, %arg1: i32) -> (i32, i32) {
    %c0_i32 = arith.constant 0 : i32
    %c0_i32_0 = arith.constant 0 : i32
    %c0_i32_1 = arith.constant 0 : i32
    return %c0_i32, %c0_i32_0 : i32, i32
  }
  func.func @transform_3(%arg0: i32, %arg1: i32) -> (i32, i32) {
    %c0_i32 = arith.constant 0 : i32
    %c0_i32_0 = arith.constant 0 : i32
    %c0_i32_1 = arith.constant 0 : i32
    return %c0_i32, %c0_i32_0 : i32, i32
  }
  func.func @transform_4(%arg0: i32, %arg1: i32) -> (i32, i32) {
    %c0_i32 = arith.constant 0 : i32
    %c0_i32_0 = arith.constant 0 : i32
    %c0_i32_1 = arith.constant 0 : i32
    return %c0_i32, %c0_i32_0 : i32, i32
  }
  func.func @transform_5(%arg0: i32, %arg1: i32) -> (i32, i32) {
    %c0_i32 = arith.constant 0 : i32
    %c0_i32_0 = arith.constant 0 : i32
    %c0_i32_1 = arith.constant 0 : i32
    return %c0_i32, %c0_i32_0 : i32, i32
  }
  func.func @transform_6(%arg0: i32, %arg1: i32) -> (i32, i32) {
    %c0_i32 = arith.constant 0 : i32
    %c0_i32_0 = arith.constant 0 : i32
    %c0_i32_1 = arith.constant 0 : i32
    return %c0_i32, %c0_i32_0 : i32, i32
  }
  func.func @transform_7(%arg0: i32, %arg1: i32) -> (i32, i32) {
    %c0_i32 = arith.constant 0 : i32
    %c0_i32_0 = arith.constant 0 : i32
    %c0_i32_1 = arith.constant 0 : i32
    return %c0_i32, %c0_i32_0 : i32, i32
  }
  func.func @transform_8(%arg0: i32, %arg1: i32) -> (i32, i32) {
    %c0_i32 = arith.constant 0 : i32
    %c0_i32_0 = arith.constant 0 : i32
    %c0_i32_1 = arith.constant 0 : i32
    return %c0_i32, %c0_i32_0 : i32, i32
  }
  func.func @transform_9(%arg0: i32, %arg1: i32) -> (i32, i32, i32) {
    %c0_i32 = arith.constant 0 : i32
    %c0_i32_0 = arith.constant 0 : i32
    return %arg0, %arg1, %c0_i32 : i32, i32, i32
  }
}

</mosaic_0001>

<llo_original>
// kernel: mamba_block_forward.1
$region0: #{mamba_block_forward.1}
  #allocation0 [shape = 'u32[]', space=smem, size = 0x4, offset = 0x4, fixed_abs, tag = 'smem constant byte address 0x4 - core index']
  #allocation1 [shape = 'u32[72,128]{1,0:T(1,128)}', space=vmem, size = 0x9000, scoped, tag = 'internal scratch']
  #allocation2 [shape = 'f32[16,128]{1,0:T(8,128)}', space=vmem, size = 0x2000, scoped, tag = 'scratch operand']
  #allocation3 [shape = 'f32[128,128]{1,0:T(8,128)}', space=vmem, size = 0x10000, scoped, tag = 'scratch operand']
  #allocation4 [shape = 'f32[128,128]{1,0:T(8,128)}', space=vmem, size = 0x10000, scoped, tag = 'scratch operand']
  #allocation5 [shape = 'f32[128,128]{1,0:T(8,128)}', space=vmem, size = 0x10000, scoped, tag = 'scratch operand']
  #allocation6 [shape = 'f32[16,128]{1,0:T(8,128)}', space=vmem, size = 0x2000, scoped, tag = 'scratch operand']
  %s0 = inlined_call_operand.vmem [shape: f32[2,16,64], index: 0, kind: input, shape index: {}]
  %s1 = inlined_call_operand.vmem [shape: bf16[64,256], index: 1, kind: input, shape index: {}]
  %s2 = inlined_call_operand.vmem [shape: f32[4,128], index: 2, kind: input, shape index: {}]
  %s3 = inlined_call_operand.vmem [shape: f32[1,128], index: 3, kind: input, shape index: {}]
  %s4 = inlined_call_operand.vmem [shape: bf16[128,160], index: 4, kind: input, shape index: {}]
  %s5 = inlined_call_operand.vmem [shape: f32[1,128], index: 5, kind: input, shape index: {}]
  %s6 = inlined_call_operand.vmem [shape: f32[16,128], index: 6, kind: input, shape index: {}]
  %s7 = inlined_call_operand.vmem [shape: f32[1,128], index: 7, kind: input, shape index: {}]
  %s8 = inlined_call_operand.vmem [shape: bf16[128,128], index: 8, kind: input, shape index: {}]
  %s9 = inlined_call_operand.hbm [shape: f32[2,16,128], index: 9, kind: output, shape index: {}]
  %s10 = sld [smem:[#allocation0]]
  $region80: #{mamba_block_forward.1} parent=0
    _
  %s12 = ssub.s32 1, %s10
  %s13 = scalar_select 0, %s12, %s10
  $region1: #{mamba_block_forward.1} parent=0
    #allocation7 [shape = 'u8[8192]{0}', space=vmem, size = 0x2000, scoped, tag = 'output window, operand 0']
    #allocation8 [shape = 's32[2]{0}', space=sflag, size = 0x8, scoped, tag = 'scoped memory for mamba_block_forward.1']
    %14 = vsyncpa [#allocation8], 0
    %s15 = scalar_lea.sflag [#allocation8], 1
    %16 = vsyncpa %s15, 0
    loop: start=0, step=1, limit=6
    $region2: #{mamba_block_forward.1} parent=1 // loop_pre_header
      _
    $region3: #{mamba_block_forward.1} parent=1 // loop_header
      %s18 = sphi 0, %s22
      %p19 = scmp.ge.s32.totalorder %s18, 6
      %s25 = sphi 0, %s37
      %s26 = sphi 0, %s33
      %s27 = sphi 0, %s25
      %s28 = sphi 0, %s26
      %s29 = sphi 0, %s27
      %s30 = sphi 0, %s28
      %s42 = sphi 0, %s44
      %s45 = sphi 0, %s42
      %s46 = sphi 0, %s45
      %s62 = sphi 0, %s46
      %s66 = sphi 0, %s66
      %s68 = sphi 0, %s66
      %s69 = sphi 0, %s68
      %s83 = sphi 0, %s69
      %s87 = sphi 0, %s87
      %s89 = sphi 0, %s87
      %s90 = sphi 0, %s89
      %s104 = sphi 0, %s90
      %s108 = sphi 0, %s108
      %s110 = sphi 0, %s108
      %s111 = sphi 0, %s110
      %s125 = sphi 0, %s111
      %s129 = sphi 0, %s129
      %s131 = sphi 0, %s129
      %s132 = sphi 0, %s131
      %s146 = sphi 0, %s132
      %s150 = sphi 0, %s150
      %s152 = sphi 0, %s150
      %s153 = sphi 0, %s152
      %s167 = sphi 0, %s153
      %s171 = sphi 0, %s171
      %s173 = sphi 0, %s171
      %s174 = sphi 0, %s173
      %s188 = sphi 0, %s174
      %s192 = sphi 0, %s192
      %s194 = sphi 0, %s192
      %s195 = sphi 0, %s194
      %s209 = sphi 0, %s195
      %s213 = sphi 0, %s213
      %s215 = sphi 0, %s213
      %s216 = sphi 0, %s215
      %s230 = sphi 0, %s216
      %s238 = sphi 0, %s240
      %s241 = sphi 0, %s238
      %s242 = sphi 0, %s241
      %s258 = sphi 0, %s242
    $region4: #{mamba_block_forward.1} parent=1 // loop_header_branch
      %21 = sbr.rel (%p19) target = $region8
    $region5: #{mamba_block_forward.1} parent=1 // loop_body
      %s23 = ssub.s32 %s18, 1
      %s24 = ssub.s32 %s18, 2
      %s31 = sadd.s32 1, %s26
      %p32 = scmp.ge.s32.totalorder %s31, 2
      %s33 = scalar_select %p32, 0, %s31
      %s34 = sadd.s32 1, %s25
      %s35 = scalar_select %p32, %s34, %s25
      %p36 = scmp.ge.s32.totalorder %s35, 2
      %s37 = scalar_select %p36, 0, %s35
      %s38 = ssub.s32 %s25, %s37
      %s39 = ssub.s32 %s26, %s33
      %s40 = sor.u32 %s38, %s39
      %p41 = scmp.eq.s32.totalorder %s40, 0
      %s43 = sadd.s32 %s42, 1
      %s44 = scalar_select %p41, %s42, %s43
      %p47 = pneg %p41
      %p48 = scmp.eq.s32.totalorder %s18, 3
      %p49 = por %p47, %p48
      %p50 = scmp.ne.s32.totalorder %s42, %s45
      %p51 = scmp.eq.s32.totalorder %s18, 0
      %p52 = por %p50, %p51
      %p53 = scmp.ne.s32.totalorder %s42, %s45
      %p54 = scmp.eq.s32.totalorder %s23, 3
      %p55 = por %p53, %p54
      %p56 = scmp.ne.s32.totalorder %s45, %s46
      %p57 = scmp.eq.s32.totalorder %s23, 0
      %p58 = por %p56, %p57
      %p59 = scmp.ne.s32.totalorder %s45, %s46
      %p60 = scmp.eq.s32.totalorder %s24, 3
      %p61 = por %p59, %p60
      %p63 = scmp.ne.s32.totalorder %s46, %s62
      %p64 = scmp.eq.s32.totalorder %s24, 0
      %p65 = por %p63, %p64
      %s67 = sadd.s32 %s66, 1
      %p70 = scmp.eq.s32.totalorder %s18, 3
      %p71 = scmp.ne.s32.totalorder %s66, %s68
      %p72 = scmp.eq.s32.totalorder %s18, 0
      %p73 = por %p71, %p72
      %p74 = scmp.ne.s32.totalorder %s66, %s68
      %p75 = scmp.eq.s32.totalorder %s23, 3
      %p76 = por %p74, %p75
      %p77 = scmp.ne.s32.totalorder %s68, %s69
      %p78 = scmp.eq.s32.totalorder %s23, 0
      %p79 = por %p77, %p78
      %p80 = scmp.ne.s32.totalorder %s68, %s69
      %p81 = scmp.eq.s32.totalorder %s24, 3
      %p82 = por %p80, %p81
      %p84 = scmp.ne.s32.totalorder %s69, %s83
      %p85 = scmp.eq.s32.totalorder %s24, 0
      %p86 = por %p84, %p85
      %s88 = sadd.s32 %s87, 1
      %p91 = scmp.eq.s32.totalorder %s18, 3
      %p92 = scmp.ne.s32.totalorder %s87, %s89
      %p93 = scmp.eq.s32.totalorder %s18, 0
      %p94 = por %p92, %p93
      %p95 = scmp.ne.s32.totalorder %s87, %s89
      %p96 = scmp.eq.s32.totalorder %s23, 3
      %p97 = por %p95, %p96
      %p98 = scmp.ne.s32.totalorder %s89, %s90
      %p99 = scmp.eq.s32.totalorder %s23, 0
      %p100 = por %p98, %p99
      %p101 = scmp.ne.s32.totalorder %s89, %s90
      %p102 = scmp.eq.s32.totalorder %s24, 3
      %p103 = por %p101, %p102
      %p105 = scmp.ne.s32.totalorder %s90, %s104
      %p106 = scmp.eq.s32.totalorder %s24, 0
      %p107 = por %p105, %p106
      %s109 = sadd.s32 %s108, 1
      %p112 = scmp.eq.s32.totalorder %s18, 3
      %p113 = scmp.ne.s32.totalorder %s108, %s110
      %p114 = scmp.eq.s32.totalorder %s18, 0
      %p115 = por %p113, %p114
      %p116 = scmp.ne.s32.totalorder %s108, %s110
      %p117 = scmp.eq.s32.totalorder %s23, 3
      %p118 = por %p116, %p117
      %p119 = scmp.ne.s32.totalorder %s110, %s111
      %p120 = scmp.eq.s32.totalorder %s23, 0
      %p121 = por %p119, %p120
      %p122 = scmp.ne.s32.totalorder %s110, %s111
      %p123 = scmp.eq.s32.totalorder %s24, 3
      %p124 = por %p122, %p123
      %p126 = scmp.ne.s32.totalorder %s111, %s125
      %p127 = scmp.eq.s32.totalorder %s24, 0
      %p128 = por %p126, %p127
      %s130 = sadd.s32 %s129, 1
      %p133 = scmp.eq.s32.totalorder %s18, 3
      %p134 = scmp.ne.s32.totalorder %s129, %s131
      %p135 = scmp.eq.s32.totalorder %s18, 0
      %p136 = por %p134, %p135
      %p137 = scmp.ne.s32.totalorder %s129, %s131
      %p138 = scmp.eq.s32.totalorder %s23, 3
      %p139 = por %p137, %p138
      %p140 = scmp.ne.s32.totalorder %s131, %s132
      %p141 = scmp.eq.s32.totalorder %s23, 0
      %p142 = por %p140, %p141
      %p143 = scmp.ne.s32.totalorder %s131, %s132
      %p144 = scmp.eq.s32.totalorder %s24, 3
      %p145 = por %p143, %p144
      %p147 = scmp.ne.s32.totalorder %s132, %s146
      %p148 = scmp.eq.s32.totalorder %s24, 0
      %p149 = por %p147, %p148
      %s151 = sadd.s32 %s150, 1
      %p154 = scmp.eq.s32.totalorder %s18, 3
      %p155 = scmp.ne.s32.totalorder %s150, %s152
      %p156 = scmp.eq.s32.totalorder %s18, 0
      %p157 = por %p155, %p156
      %p158 = scmp.ne.s32.totalorder %s150, %s152
      %p159 = scmp.eq.s32.totalorder %s23, 3
      %p160 = por %p158, %p159
      %p161 = scmp.ne.s32.totalorder %s152, %s153
      %p162 = scmp.eq.s32.totalorder %s23, 0
      %p163 = por %p161, %p162
      %p164 = scmp.ne.s32.totalorder %s152, %s153
      %p165 = scmp.eq.s32.totalorder %s24, 3
      %p166 = por %p164, %p165
      %p168 = scmp.ne.s32.totalorder %s153, %s167
      %p169 = scmp.eq.s32.totalorder %s24, 0
      %p170 = por %p168, %p169
      %s172 = sadd.s32 %s171, 1
      %p175 = scmp.eq.s32.totalorder %s18, 3
      %p176 = scmp.ne.s32.totalorder %s171, %s173
      %p177 = scmp.eq.s32.totalorder %s18, 0
      %p178 = por %p176, %p177
      %p179 = scmp.ne.s32.totalorder %s171, %s173
      %p180 = scmp.eq.s32.totalorder %s23, 3
      %p181 = por %p179, %p180
      %p182 = scmp.ne.s32.totalorder %s173, %s174
      %p183 = scmp.eq.s32.totalorder %s23, 0
      %p184 = por %p182, %p183
      %p185 = scmp.ne.s32.totalorder %s173, %s174
      %p186 = scmp.eq.s32.totalorder %s24, 3
      %p187 = por %p185, %p186
      %p189 = scmp.ne.s32.totalorder %s174, %s188
      %p190 = scmp.eq.s32.totalorder %s24, 0
      %p191 = por %p189, %p190
      %s193 = sadd.s32 %s192, 1
      %p196 = scmp.eq.s32.totalorder %s18, 3
      %p197 = scmp.ne.s32.totalorder %s192, %s194
      %p198 = scmp.eq.s32.totalorder %s18, 0
      %p199 = por %p197, %p198
      %p200 = scmp.ne.s32.totalorder %s192, %s194
      %p201 = scmp.eq.s32.totalorder %s23, 3
      %p202 = por %p200, %p201
      %p203 = scmp.ne.s32.totalorder %s194, %s195
      %p204 = scmp.eq.s32.totalorder %s23, 0
      %p205 = por %p203, %p204
      %p206 = scmp.ne.s32.totalorder %s194, %s195
      %p207 = scmp.eq.s32.totalorder %s24, 3
      %p208 = por %p206, %p207
      %p210 = scmp.ne.s32.totalorder %s195, %s209
      %p211 = scmp.eq.s32.totalorder %s24, 0
      %p212 = por %p210, %p211
      %s214 = sadd.s32 %s213, 1
      %p217 = scmp.eq.s32.totalorder %s18, 3
      %p218 = scmp.ne.s32.totalorder %s213, %s215
      %p219 = scmp.eq.s32.totalorder %s18, 0
      %p220 = por %p218, %p219
      %p221 = scmp.ne.s32.totalorder %s213, %s215
      %p222 = scmp.eq.s32.totalorder %s23, 3
      %p223 = por %p221, %p222
      %p224 = scmp.ne.s32.totalorder %s215, %s216
      %p225 = scmp.eq.s32.totalorder %s23, 0
      %p226 = por %p224, %p225
      %p227 = scmp.ne.s32.totalorder %s215, %s216
      %p228 = scmp.eq.s32.totalorder %s24, 3
      %p229 = por %p227, %p228
      %p231 = scmp.ne.s32.totalorder %s216, %s230
      %p232 = scmp.eq.s32.totalorder %s24, 0
      %p233 = por %p231, %p232
      %s234 = ssub.s32 %s25, %s37
      %s235 = ssub.s32 %s26, %s33
      %s236 = sor.u32 %s234, %s235
      %p237 = scmp.eq.s32.totalorder %s236, 0
      %s239 = sadd.s32 %s238, 1
      %s240 = scalar_select %p237, %s238, %s239
      %p243 = pneg %p237
      %p244 = scmp.eq.s32.totalorder %s18, 3
      %p245 = por %p243, %p244
      %p246 = scmp.ne.s32.totalorder %s238, %s241
      %p247 = scmp.eq.s32.totalorder %s18, 0
      %p248 = por %p246, %p247
      %p249 = scmp.ne.s32.totalorder %s238, %s241
      %p250 = scmp.eq.s32.totalorder %s23, 3
      %p251 = por %p249, %p250
      %p252 = scmp.ne.s32.totalorder %s241, %s242
      %p253 = scmp.eq.s32.totalorder %s23, 0
      %p254 = por %p252, %p253
      %p255 = scmp.ne.s32.totalorder %s241, %s242
      %p256 = scmp.eq.s32.totalorder %s24, 3
      %p257 = por %p255, %p256
      %p259 = scmp.ne.s32.totalorder %s242, %s258
      %p260 = scmp.eq.s32.totalorder %s24, 0
      %p261 = por %p259, %p260
      %p262 = scmp.le.s32.totalorder 1, %s18
      %p263 = scmp.lt.s32.totalorder %s18, 5
      %p264 = pnand %p262, %p263
      %p265 = pneg %p264
      // Predicated region
      $region9: #{mamba_block_forward.1} parent=5 // pred_check
        _
      $region10: #{mamba_block_forward.1} parent=5 // pred_check_branch
        %267 = sbr.rel (%p264) target = $region12
      $region11: #{mamba_block_forward.1} parent=5 // pred_region
        %s268 = ssub.s32 %s18, 1
        // Predicated region
        $region13: #{mamba_block_forward.1} parent=11 // pred_check
          %p269 = pneg %p79
        $region14: #{mamba_block_forward.1} parent=11 // pred_check_branch
          %271 = sbr.rel (%p269) target = $region16
        $region15: #{mamba_block_forward.1} parent=11 // pred_region
          _
        $region16: #{mamba_block_forward.1} parent=11 // pred_fallthru
          _
        // Predicated region
        $region17: #{mamba_block_forward.1} parent=11 // pred_check
          %p272 = pneg %p100
        $region18: #{mamba_block_forward.1} parent=11 // pred_check_branch
          %274 = sbr.rel (%p272) target = $region20
        $region19: #{mamba_block_forward.1} parent=11 // pred_region
          _
        $region20: #{mamba_block_forward.1} parent=11 // pred_fallthru
          _
        // Predicated region
        $region21: #{mamba_block_forward.1} parent=11 // pred_check
          %p275 = pneg %p121
        $region22: #{mamba_block_forward.1} parent=11 // pred_check_branch
          %277 = sbr.rel (%p275) target = $region24
        $region23: #{mamba_block_forward.1} parent=11 // pred_region
          _
        $region24: #{mamba_block_forward.1} parent=11 // pred_fallthru
          _
        // Predicated region
        $region25: #{mamba_block_forward.1} parent=11 // pred_check
          %p278 = pneg %p142
        $region26: #{mamba_block_forward.1} parent=11 // pred_check_branch
          %280 = sbr.rel (%p278) target = $region28
        $region27: #{mamba_block_forward.1} parent=11 // pred_region
          _
        $region28: #{mamba_block_forward.1} parent=11 // pred_fallthru
          _
        // Predicated region
        $region29: #{mamba_block_forward.1} parent=11 // pred_check
          %p281 = pneg %p163
        $region30: #{mamba_block_forward.1} parent=11 // pred_check_branch
          %283 = sbr.rel (%p281) target = $region32
        $region31: #{mamba_block_forward.1} parent=11 // pred_region
          _
        $region32: #{mamba_block_forward.1} parent=11 // pred_fallthru
          _
        // Predicated region
        $region33: #{mamba_block_forward.1} parent=11 // pred_check
          %p284 = pneg %p184
        $region34: #{mamba_block_forward.1} parent=11 // pred_check_branch
          %286 = sbr.rel (%p284) target = $region36
        $region35: #{mamba_block_forward.1} parent=11 // pred_region
          _
        $region36: #{mamba_block_forward.1} parent=11 // pred_fallthru
          _
        // Predicated region
        $region37: #{mamba_block_forward.1} parent=11 // pred_check
          %p287 = pneg %p205
        $region38: #{mamba_block_forward.1} parent=11 // pred_check_branch
          %289 = sbr.rel (%p287) target = $region40
        $region39: #{mamba_block_forward.1} parent=11 // pred_region
          _
        $region40: #{mamba_block_forward.1} parent=11 // pred_fallthru
          _
        // Predicated region
        $region41: #{mamba_block_forward.1} parent=11 // pred_check
          %p290 = pneg %p226
        $region42: #{mamba_block_forward.1} parent=11 // pred_check_branch
          %292 = sbr.rel (%p290) target = $region44
        $region43: #{mamba_block_forward.1} parent=11 // pred_region
          _
        $region44: #{mamba_block_forward.1} parent=11 // pred_fallthru
          _
      $region12: #{mamba_block_forward.1} parent=5 // pred_fallthru
        _
      %p293 = scmp.lt.s32.totalorder %s18, 4
      // Predicated region
      $region45: #{mamba_block_forward.1} parent=5 // pred_check
        %p294 = pneg %p293
      $region46: #{mamba_block_forward.1} parent=5 // pred_check_branch
        %296 = sbr.rel (%p294) target = $region48
      $region47: #{mamba_block_forward.1} parent=5 // pred_region
        // Predicated region
        $region49: #{mamba_block_forward.1} parent=47 // pred_check
          %p297 = pneg %p52
        $region50: #{mamba_block_forward.1} parent=47 // pred_check_branch
          %299 = sbr.rel (%p297) target = $region52
        $region51: #{mamba_block_forward.1} parent=47 // pred_region
          %p300 = scmp.lt.s32.totalorder %s25, 1
          %s301 = scalar_select %p300, %s25, 1
          %p302 = scmp.lt.s32.totalorder %s26, 1
          %s303 = scalar_select %p302, %s26, 1
          %s304 = smul.addr %s301, 2
          %s305 = sadd.s32 %s303, %s304
          %s306 = smul.addr %s305, 8
          %s307 = scalar_lea.vmem %s0, %s306
        $region52: #{mamba_block_forward.1} parent=47 // pred_fallthru
          _
      $region48: #{mamba_block_forward.1} parent=5 // pred_fallthru
        _
      %p308 = scmp.le.s32.totalorder 1, %s18
      %p309 = scmp.lt.s32.totalorder %s18, 5
      %p310 = pnand %p308, %p309
      %p311 = pneg %p310
      // Predicated region
      $region53: #{mamba_block_forward.1} parent=5 // pred_check
        _
      $region54: #{mamba_block_forward.1} parent=5 // pred_check_branch
        %313 = sbr.rel (%p310) target = $region56
      $region55: #{mamba_block_forward.1} parent=5 // pred_region
        %s314 = ssub.s32 %s18, 1
        %p315 = scmp.lt.s32.totalorder %s27, 1
        %s316 = scalar_select %p315, %s27, 1
        %p317 = scmp.lt.s32.totalorder %s28, 1
        %s318 = scalar_select %p317, %s28, 1
        %s319 = smul.addr %s316, 2
        %s320 = sadd.s32 %s318, %s319
        %s321 = smul.addr %s320, 8
        %s322 = scalar_lea.vmem %s0, %s321
        %p323 = pneg %p58
        %p324 = pneg %p55
        %p325 = pneg %p79
        %p326 = pneg %p76
        %p327 = pneg %p100
        %p328 = pneg %p97
        %p329 = pneg %p121
        %p330 = pneg %p118
        %p331 = pneg %p142
        %p332 = pneg %p139
        %p333 = pneg %p163
        %p334 = pneg %p160
        %p335 = pneg %p184
        %p336 = pneg %p181
        %p337 = pneg %p205
        %p338 = pneg %p202
        %p339 = pneg %p226
        %p340 = pneg %p223
        %p341 = pneg %p254
        %p342 = pneg %p251
        %s343 = sand.u32 %s241, 1
        %s344 = scalar_lea.sflag [#allocation8], %s343
        %s345 = sand.u32 %s241, 1
        %s346 = smul.addr %s345, 8
        %s347 = scalar_lea.vmem [#allocation7], %s346
        %p348 = scmp.lt.s32.totalorder %s27, 1
        %s349 = scalar_select %p348, %s27, 1
        %p350 = scmp.lt.s32.totalorder %s28, 1
        %s351 = scalar_select %p350, %s28, 1
        %s352 = smul.addr %s349, 2
        %s353 = sadd.s32 %s351, %s352
        %s354 = smul.addr %s353, 8
        %s355 = scalar_lea.vmem %s0, %s354
        %p357 = scmp.eq.s32.totalorder %s28, 0
        // Predicated region
        $region57: #{mamba_block_forward.1} parent=55 // pred_check
          %p358 = pneg %p357
        $region58: #{mamba_block_forward.1} parent=55 // pred_check_branch
          %360 = sbr.rel (%p358) target = $region60
        $region59: #{mamba_block_forward.1} parent=55 // pred_region
          %361 = vst [vmem:[#allocation6] sm:$0xff] 0.0
          %362 = vst [vmem:[#allocation6 + $0x8] sm:$0xff] 0.0
          %363 = vst [vmem:[#allocation2] sm:$0xff] 0.0
        $region60: #{mamba_block_forward.1} parent=55 // pred_fallthru
          _
        %v364 = vld [vmem:[%s355] sm:$0xff]
        %v365 = vpack.c.bf16 %v364, %v364
        %v366 = vld [vmem:[%s1] sm:$0xff]
        %v367 = vld [vmem:[%s1 + $0x8] sm:$0xff]
        %v368 = vld [vmem:[%s1 + $0x10] sm:$0xff]
        %v369 = vld [vmem:[%s1 + $0x18] sm:$0xff]
        %v370 = vld [vmem:[%s1 + $0x20] sm:$0xff]
        %v371 = vld [vmem:[%s1 + $0x28] sm:$0xff]
        %v372 = vld [vmem:[%s1 + $0x30] sm:$0xff]
        %v373 = vld [vmem:[%s1 + $0x38] sm:$0xff]
        %v382 = vunpack.c.l.b16 %v366
        %v383 = vunpack.c.h.b16 %v366
        %v384 = vunpack.c.l.b16 %v367
        %v385 = vunpack.c.h.b16 %v367
        %v386 = vunpack.c.l.b16 %v368
        %v387 = vunpack.c.h.b16 %v368
        %v388 = vunpack.c.l.b16 %v369
        %v389 = vunpack.c.h.b16 %v369
        %v390 = vunpack.c.l.b16 %v370
        %v391 = vunpack.c.h.b16 %v370
        %v392 = vunpack.c.l.b16 %v371
        %v393 = vunpack.c.h.b16 %v371
        %v394 = vunpack.c.l.b16 %v372
        %v395 = vunpack.c.h.b16 %v372
        %v396 = vunpack.c.l.b16 %v373
        %v397 = vunpack.c.h.b16 %v373
        %v398 = vpack.c.b16 %v384, %v382
        %v399 = vpack.c.b16 %v385, %v383
        %v400 = vpack.c.b16 %v388, %v386
        %v401 = vpack.c.b16 %v389, %v387
        %v402 = vpack.c.b16 %v392, %v390
        %v403 = vpack.c.b16 %v393, %v391
        %v404 = vpack.c.b16 %v396, %v394
        %v405 = vpack.c.b16 %v397, %v395
        %vm414 = vcmask 523264
        %v416 = vsel %vm414, %v365, 0
        %418 = vmatpush.bf16.msra.mxu0 0
        %419 = vmatpush.bf16.msra.mxu0 0
        %420 = vmatpush.bf16.msra.mxu0 0
        %421 = vmatpush.bf16.msra.mxu0 0
        %422 = vmatpush.bf16.msra.mxu0 %v404
        %423 = vmatpush.bf16.msra.mxu0 %v402
        %424 = vmatpush.bf16.msra.mxu0 %v400
        %425 = vmatpush.bf16.msra.mxu0 %v398
        %426 = vmatmul.bf16.gmra.mxu0 %v416
        %v427 = vpop.f32.mrf.mxu0
        %v428 = vadd.f32 0.0, %v427
        %v429 = vpop.f32.mrf.mxu0
        %430 = vdwg.mxu0
        %431 = vmatpush.bf16.msra.mxu0 0
        %432 = vmatpush.bf16.msra.mxu0 0
        %433 = vmatpush.bf16.msra.mxu0 0
        %434 = vmatpush.bf16.msra.mxu0 0
        %435 = vmatpush.bf16.msra.mxu0 %v405
        %436 = vmatpush.bf16.msra.mxu0 %v403
        %437 = vmatpush.bf16.msra.mxu0 %v401
        %438 = vmatpush.bf16.msra.mxu0 %v399
        %439 = vmatmul.bf16.gmra.mxu0 %v416
        %v440 = vpop.f32.mrf.mxu0
        %v441 = vadd.f32 0.0, %v440
        %v442 = vpop.f32.mrf.mxu0
        %443 = vdwg.mxu0
        %444 = vst [vmem:[#allocation2 + $0x8] sm:$0xff] %v428
        %v445 = vld [vmem:[%s2] sm:$0xf]
        %v446 = vld [vmem:[%s3] sm:$0x1]
        %v447 = vld [vmem:[#allocation2 + $0x5] sm:$0xff]
        %v448 = vperm.slane %v445, 0
        %v449 = vmul.f32 %v447, %v448
        %v451 = vperm.slane %v446, 0
        %v453 = vadd.f32 %v451, %v449
        %v454 = vld [vmem:[#allocation2 + $0x6] sm:$0xff]
        %v455 = vperm.slane %v445, 1
        %v456 = vmul.f32 %v454, %v455
        %v457 = vadd.f32 %v453, %v456
        %v458 = vld [vmem:[#allocation2 + $0x7] sm:$0xff]
        %v459 = vperm.slane %v445, 2
        %v460 = vmul.f32 %v458, %v459
        %v461 = vadd.f32 %v457, %v460
        %v462 = vld [vmem:[#allocation2 + $0x8] sm:$0xff]
        %v463 = vperm.slane %v445, 3
        %v464 = vmul.f32 %v462, %v463
        %v465 = vadd.f32 %v461, %v464
        %v466 = vsub.f32 0.0, %v465
        %v467 = vmul.f32 %v466, 1.442695
        %v468 = vpow.pop %v467
        %v469 = vadd.f32 %v468, 1.0
        %v470 = vrcp.pop %v469
        %v471 = vmul.f32 %v469, %v470
        %v472 = vsub.f32 1.0, %v471
        %v473 = vmul.f32 %v470, %v472
        %v474 = vadd.f32 %v470, %v473
        %vm475 = vweird.f32 %v469
        %vm476 = vweird.f32 %v470
        %vm477 = vmor %vm475, %vm476
        %v478 = vsel %vm477, %v470, %v474
        %v479 = vand.u32 2147483647, %v469
        %vm480 = vcmp.eq.f32.partialorder %v479, 8.507059e+37
        %v481 = vand.u32 %v469, 2147483648
        %v482 = vor.u32 1.1754944e-38, %v481
        %v483 = vsel %vm480, %v482, %v478
        %v484 = vmul.f32 1.0, %v483
        %v485 = vmul.f32 %v465, %v484
        %486 = vst [vmem:[#allocation2] sm:$0xe0] %v428
        %v487 = vpack.c.bf16 %v485, %v485
        %v488 = vld [vmem:[%s4] sm:$0xff]
        %v489 = vld [vmem:[%s4 + $0x8] sm:$0xff]
        %v490 = vld [vmem:[%s4 + $0x10] sm:$0xff]
        %v491 = vld [vmem:[%s4 + $0x18] sm:$0xff]
        %v492 = vld [vmem:[%s4 + $0x20] sm:$0xff]
        %v493 = vld [vmem:[%s4 + $0x28] sm:$0xff]
        %v494 = vld [vmem:[%s4 + $0x30] sm:$0xff]
        %v495 = vld [vmem:[%s4 + $0x38] sm:$0xff]
        %v496 = vld [vmem:[%s4 + $0x40] sm:$0xff]
        %v497 = vld [vmem:[%s4 + $0x48] sm:$0xff]
        %v498 = vld [vmem:[%s4 + $0x50] sm:$0xff]
        %v499 = vld [vmem:[%s4 + $0x58] sm:$0xff]
        %v500 = vld [vmem:[%s4 + $0x60] sm:$0xff]
        %v501 = vld [vmem:[%s4 + $0x68] sm:$0xff]
        %v502 = vld [vmem:[%s4 + $0x70] sm:$0xff]
        %v503 = vld [vmem:[%s4 + $0x78] sm:$0xff]
        %v520 = vunpack.c.l.b16 %v488
        %v521 = vunpack.c.h.b16 %v488
        %v522 = vunpack.c.l.b16 %v489
        %v523 = vunpack.c.h.b16 %v489
        %v524 = vunpack.c.l.b16 %v490
        %v525 = vunpack.c.h.b16 %v490
        %v526 = vunpack.c.l.b16 %v491
        %v527 = vunpack.c.h.b16 %v491
        %v528 = vunpack.c.l.b16 %v492
        %v529 = vunpack.c.h.b16 %v492
        %v530 = vunpack.c.l.b16 %v493
        %v531 = vunpack.c.h.b16 %v493
        %v532 = vunpack.c.l.b16 %v494
        %v533 = vunpack.c.h.b16 %v494
        %v534 = vunpack.c.l.b16 %v495
        %v535 = vunpack.c.h.b16 %v495
        %v536 = vunpack.c.l.b16 %v496
        %v537 = vunpack.c.h.b16 %v496
        %v538 = vunpack.c.l.b16 %v497
        %v539 = vunpack.c.h.b16 %v497
        %v540 = vunpack.c.l.b16 %v498
        %v541 = vunpack.c.h.b16 %v498
        %v542 = vunpack.c.l.b16 %v499
        %v543 = vunpack.c.h.b16 %v499
        %v544 = vunpack.c.l.b16 %v500
        %v545 = vunpack.c.h.b16 %v500
        %v546 = vunpack.c.l.b16 %v501
        %v547 = vunpack.c.h.b16 %v501
        %v548 = vunpack.c.l.b16 %v502
        %v549 = vunpack.c.h.b16 %v502
        %v550 = vunpack.c.l.b16 %v503
        %v551 = vunpack.c.h.b16 %v503
        %v552 = vpack.c.b16 %v522, %v520
        %v553 = vpack.c.b16 %v523, %v521
        %v554 = vpack.c.b16 %v526, %v524
        %v555 = vpack.c.b16 %v527, %v525
        %v556 = vpack.c.b16 %v530, %v528
        %v557 = vpack.c.b16 %v531, %v529
        %v558 = vpack.c.b16 %v534, %v532
        %v559 = vpack.c.b16 %v535, %v533
        %v560 = vpack.c.b16 %v538, %v536
        %v561 = vpack.c.b16 %v539, %v537
        %v562 = vpack.c.b16 %v542, %v540
        %v563 = vpack.c.b16 %v543, %v541
        %v564 = vpack.c.b16 %v546, %v544
        %v565 = vpack.c.b16 %v547, %v545
        %v566 = vpack.c.b16 %v550, %v548
        %v567 = vpack.c.b16 %v551, %v549
        %584 = vmatpush.bf16.msra.mxu0 %v566
        %585 = vmatpush.bf16.msra.mxu0 %v564
        %586 = vmatpush.bf16.msra.mxu0 %v562
        %587 = vmatpush.bf16.msra.mxu0 %v560
        %588 = vmatpush.bf16.msra.mxu0 %v558
        %589 = vmatpush.bf16.msra.mxu0 %v556
        %590 = vmatpush.bf16.msra.mxu0 %v554
        %591 = vmatpush.bf16.msra.mxu0 %v552
        %592 = vmatmul.bf16.gmra.mxu0 %v487
        %v593 = vpop.f32.mrf.mxu0
        %v594 = vadd.f32 0.0, %v593
        %v595 = vpop.f32.mrf.mxu0
        %596 = vdwg.mxu0
        %597 = vmatpush.bf16.msra.mxu0 %v567
        %598 = vmatpush.bf16.msra.mxu0 %v565
        %599 = vmatpush.bf16.msra.mxu0 %v563
        %600 = vmatpush.bf16.msra.mxu0 %v561
        %601 = vmatpush.bf16.msra.mxu0 %v559
        %602 = vmatpush.bf16.msra.mxu0 %v557
        %603 = vmatpush.bf16.msra.mxu0 %v555
        %604 = vmatpush.bf16.msra.mxu0 %v553
        %605 = vmatmul.bf16.gmra.mxu0 %v487
        %v606 = vpop.f32.mrf.mxu0
        %v607 = vadd.f32 0.0, %v606
        %v608 = vpop.f32.mrf.mxu0
        %609 = vdwg.mxu0
        %v610 = vld [vmem:[%s5] sm:$0x1]
        %v612 = vperm.slane %v610, 0
        %v614 = vadd.f32 %v594, %v612
        %v615 = vmax.f32 %v614, 0.0
        %v616 = vand.u32 2147483647, %v614
        %v617 = vsub.f32 0.0, %v616
        %v618 = vmul.f32 %v617, 1.442695
        %v619 = vpow.pop %v618
        %v620 = vadd.f32 %v619, 1.0
        %v621 = vlog2.pop %v620
        %v622 = vmul.f32 %v621, 0.6931472
        %v623 = vadd.f32 %v615, %v622
        %v624 = vld [vmem:[%s6] sm:$0xff]
        %v625 = vld [vmem:[%s6 + $0x8] sm:$0xff]
        %v626 = vmul.f32 %v623, %v485
        %v627 = vperm.slane %v624, 0
        %v628 = vmul.f32 %v623, %v627
        %v629 = vmul.f32 %v628, 1.442695
        %v630 = vpow.pop %v629
        %631 = vst [vmem:[#allocation3] sm:$0xff] %v630
        %633 = vset.pattern.permute.xlu0 0
        %634 = vperm.xlu0 %633, %v607
        %v635 = vpop.permute.xlu0 %634
        %v637 = vmul.f32 %v635, %v626
        %638 = vst [vmem:[#allocation4] sm:$0xff] %v637
        %v639 = vperm.slane %v624, 1
        %v640 = vmul.f32 %v623, %v639
        %v641 = vmul.f32 %v640, 1.442695
        %v642 = vpow.pop %v641
        %643 = vst [vmem:[#allocation3 + $0x8] sm:$0xff] %v642
        %644 = vset.pattern.permute.xlu0 1
        %645 = vperm.xlu0 %644, %v607
        %v646 = vpop.permute.xlu0 %645
        %v648 = vmul.f32 %v646, %v626
        %649 = vst [vmem:[#allocation4 + $0x8] sm:$0xff] %v648
        %v650 = vperm.slane %v624, 2
        %v651 = vmul.f32 %v623, %v650
        %v652 = vmul.f32 %v651, 1.442695
        %v653 = vpow.pop %v652
        %654 = vst [vmem:[#allocation3 + $0x10] sm:$0xff] %v653
        %655 = vset.pattern.permute.xlu0 2
        %656 = vperm.xlu0 %655, %v607
        %v657 = vpop.permute.xlu0 %656
        %v659 = vmul.f32 %v657, %v626
        %660 = vst [vmem:[#allocation4 + $0x10] sm:$0xff] %v659
        %v661 = vperm.slane %v624, 3
        %v662 = vmul.f32 %v623, %v661
        %v663 = vmul.f32 %v662, 1.442695
        %v664 = vpow.pop %v663
        %665 = vst [vmem:[#allocation3 + $0x18] sm:$0xff] %v664
        %666 = vset.pattern.permute.xlu0 3
        %667 = vperm.xlu0 %666, %v607
        %v668 = vpop.permute.xlu0 %667
        %v670 = vmul.f32 %v668, %v626
        %671 = vst [vmem:[#allocation4 + $0x18] sm:$0xff] %v670
        %v672 = vperm.slane %v624, 4
        %v673 = vmul.f32 %v623, %v672
        %v674 = vmul.f32 %v673, 1.442695
        %v675 = vpow.pop %v674
        %676 = vst [vmem:[#allocation3 + $0x20] sm:$0xff] %v675
        %677 = vset.pattern.permute.xlu0 4
        %678 = vperm.xlu0 %677, %v607
        %v679 = vpop.permute.xlu0 %678
        %v681 = vmul.f32 %v679, %v626
        %682 = vst [vmem:[#allocation4 + $0x20] sm:$0xff] %v681
        %v683 = vperm.slane %v624, 5
        %v684 = vmul.f32 %v623, %v683
        %v685 = vmul.f32 %v684, 1.442695
        %v686 = vpow.pop %v685
        %687 = vst [vmem:[#allocation3 + $0x28] sm:$0xff] %v686
        %688 = vset.pattern.permute.xlu0 5
        %689 = vperm.xlu0 %688, %v607
        %v690 = vpop.permute.xlu0 %689
        %v692 = vmul.f32 %v690, %v626
        %693 = vst [vmem:[#allocation4 + $0x28] sm:$0xff] %v692
        %v694 = vperm.slane %v624, 6
        %v695 = vmul.f32 %v623, %v694
        %v696 = vmul.f32 %v695, 1.442695
        %v697 = vpow.pop %v696
        %698 = vst [vmem:[#allocation3 + $0x30] sm:$0xff] %v697
        %699 = vset.pattern.permute.xlu0 6
        %700 = vperm.xlu0 %699, %v607
        %v701 = vpop.permute.xlu0 %700
        %v703 = vmul.f32 %v701, %v626
        %704 = vst [vmem:[#allocation4 + $0x30] sm:$0xff] %v703
        %v705 = vperm.slane %v624, 7
        %v706 = vmul.f32 %v623, %v705
        %v707 = vmul.f32 %v706, 1.442695
        %v708 = vpow.pop %v707
        %709 = vst [vmem:[#allocation3 + $0x38] sm:$0xff] %v708
        %710 = vset.pattern.permute.xlu0 7
        %711 = vperm.xlu0 %710, %v607
        %v712 = vpop.permute.xlu0 %711
        %v714 = vmul.f32 %v712, %v626
        %715 = vst [vmem:[#allocation4 + $0x38] sm:$0xff] %v714
        %v716 = vperm.slane %v625, 0
        %v717 = vmul.f32 %v623, %v716
        %v718 = vmul.f32 %v717, 1.442695
        %v719 = vpow.pop %v718
        %720 = vst [vmem:[#allocation3 + $0x40] sm:$0xff] %v719
        %721 = vset.pattern.permute.xlu0 8
        %722 = vperm.xlu0 %721, %v607
        %v723 = vpop.permute.xlu0 %722
        %v725 = vmul.f32 %v723, %v626
        %726 = vst [vmem:[#allocation4 + $0x40] sm:$0xff] %v725
        %v727 = vperm.slane %v625, 1
        %v728 = vmul.f32 %v623, %v727
        %v729 = vmul.f32 %v728, 1.442695
        %v730 = vpow.pop %v729
        %731 = vst [vmem:[#allocation3 + $0x48] sm:$0xff] %v730
        %732 = vset.pattern.permute.xlu0 9
        %733 = vperm.xlu0 %732, %v607
        %v734 = vpop.permute.xlu0 %733
        %v736 = vmul.f32 %v734, %v626
        %737 = vst [vmem:[#allocation4 + $0x48] sm:$0xff] %v736
        %v738 = vperm.slane %v625, 2
        %v739 = vmul.f32 %v623, %v738
        %v740 = vmul.f32 %v739, 1.442695
        %v741 = vpow.pop %v740
        %742 = vst [vmem:[#allocation3 + $0x50] sm:$0xff] %v741
        %743 = vset.pattern.permute.xlu0 10
        %744 = vperm.xlu0 %743, %v607
        %v745 = vpop.permute.xlu0 %744
        %v747 = vmul.f32 %v745, %v626
        %748 = vst [vmem:[#allocation4 + $0x50] sm:$0xff] %v747
        %v749 = vperm.slane %v625, 3
        %v750 = vmul.f32 %v623, %v749
        %v751 = vmul.f32 %v750, 1.442695
        %v752 = vpow.pop %v751
        %753 = vst [vmem:[#allocation3 + $0x58] sm:$0xff] %v752
        %754 = vset.pattern.permute.xlu0 11
        %755 = vperm.xlu0 %754, %v607
        %v756 = vpop.permute.xlu0 %755
        %v758 = vmul.f32 %v756, %v626
        %759 = vst [vmem:[#allocation4 + $0x58] sm:$0xff] %v758
        %v760 = vperm.slane %v625, 4
        %v761 = vmul.f32 %v623, %v760
        %v762 = vmul.f32 %v761, 1.442695
        %v763 = vpow.pop %v762
        %764 = vst [vmem:[#allocation3 + $0x60] sm:$0xff] %v763
        %765 = vset.pattern.permute.xlu0 12
        %766 = vperm.xlu0 %765, %v607
        %v767 = vpop.permute.xlu0 %766
        %v769 = vmul.f32 %v767, %v626
        %770 = vst [vmem:[#allocation4 + $0x60] sm:$0xff] %v769
        %v771 = vperm.slane %v625, 5
        %v772 = vmul.f32 %v623, %v771
        %v773 = vmul.f32 %v772, 1.442695
        %v774 = vpow.pop %v773
        %775 = vst [vmem:[#allocation3 + $0x68] sm:$0xff] %v774
        %776 = vset.pattern.permute.xlu0 13
        %777 = vperm.xlu0 %776, %v607
        %v778 = vpop.permute.xlu0 %777
        %v780 = vmul.f32 %v778, %v626
        %781 = vst [vmem:[#allocation4 + $0x68] sm:$0xff] %v780
        %v782 = vperm.slane %v625, 6
        %v783 = vmul.f32 %v623, %v782
        %v784 = vmul.f32 %v783, 1.442695
        %v785 = vpow.pop %v784
        %786 = vst [vmem:[#allocation3 + $0x70] sm:$0xff] %v785
        %787 = vset.pattern.permute.xlu0 14
        %788 = vperm.xlu0 %787, %v607
        %v789 = vpop.permute.xlu0 %788
        %v791 = vmul.f32 %v789, %v626
        %792 = vst [vmem:[#allocation4 + $0x70] sm:$0xff] %v791
        %v793 = vperm.slane %v625, 7
        %v794 = vmul.f32 %v623, %v793
        %v795 = vmul.f32 %v794, 1.442695
        %v796 = vpow.pop %v795
        %797 = vst [vmem:[#allocation3 + $0x78] sm:$0xff] %v796
        %798 = vset.pattern.permute.xlu0 15
        %799 = vperm.xlu0 %798, %v607
        %v800 = vpop.permute.xlu0 %799
        %v802 = vmul.f32 %v800, %v626
        %803 = vst [vmem:[#allocation4 + $0x78] sm:$0xff] %v802
        %v804 = vld [vmem:[#allocation6] sm:$0xff]
        %v805 = vld [vmem:[#allocation6 + $0x8] sm:$0xff]
        loop: start=0, step=1, limit=8
        $region61: #{mamba_block_forward.1} parent=55 // loop_pre_header
          _
        $region62: #{mamba_block_forward.1} parent=55 // loop_header
          %s807 = sphi 0, %s811
          %p808 = scmp.ge.s32.totalorder %s807, 8
          %v812 = vphi %v804, %v832
          %v813 = vphi %v805, %v833
        $region63: #{mamba_block_forward.1} parent=55 // loop_header_branch
          %810 = sbr.rel (%p808) target = $region67
        $region64: #{mamba_block_forward.1} parent=55 // loop_body
          %s814 = scalar_lea.vmem [#allocation3], %s807
          %v815 = vld [vmem:[%s814] ss:$8 sm:$0xf]
          %v816 = vld [vmem:[%s814] ss:$8 sm:$0xf0]
          %v817 = vor.u32 %v815, %v816
          %s818 = scalar_lea.vmem %s814, 64 [#allocation3]
          %v819 = vld [vmem:[%s818] ss:$8 sm:$0xf]
          %v820 = vld [vmem:[%s818] ss:$8 sm:$0xf0]
          %v821 = vor.u32 %v819, %v820
          %v822 = vmul.f32 %v817, %v812
          %v823 = vmul.f32 %v821, %v813
          %s824 = scalar_lea.vmem [#allocation4], %s807
          %v825 = vld [vmem:[%s824] ss:$8 sm:$0xf]
          %v826 = vld [vmem:[%s824] ss:$8 sm:$0xf0]
          %v827 = vor.u32 %v825, %v826
          %s828 = scalar_lea.vmem %s824, 64 [#allocation4]
          %v829 = vld [vmem:[%s828] ss:$8 sm:$0xf]
          %v830 = vld [vmem:[%s828] ss:$8 sm:$0xf0]
          %v831 = vor.u32 %v829, %v830
          %v832 = vadd.f32 %v822, %v827
          %v833 = vadd.f32 %v823, %v831
          %s834 = smul.u32 %s807, 16
          %s835 = scalar_lea.vmem [#allocation5], %s834
          %836 = vst [vmem:[%s835] sm:$0xff] %v832
          %837 = vst [vmem:[%s835 + $0x8] sm:$0xff] %v833
        $region65: #{mamba_block_forward.1} parent=55 // loop_footer
          %s811 = sadd.s32 1, %s807
        $region66: #{mamba_block_forward.1} parent=55 // loop_footer_branch
          %806 = sbr.rel target = $region62
        $region67: #{mamba_block_forward.1} parent=55 // loop_exit
          _
        %838 = vst [vmem:[#allocation6] sm:$0xff] %v812
        %839 = vst [vmem:[#allocation6 + $0x8] sm:$0xff] %v813
        %v840 = vld [vmem:[%s7] sm:$0x1]
        %v842 = vperm.slane %v840, 0
        %v844 = vmul.f32 %v842, %v485
        %v845 = vld [vmem:[#allocation5] ss:$16 sm:$0x3]
        %v846 = vld [vmem:[#allocation5] ss:$16 sm:$0xc]
        %v847 = vor.u32 %v845, %v846
        %v848 = vld [vmem:[#allocation5] ss:$16 sm:$0x30]
        %v849 = vor.u32 %v847, %v848
        %v850 = vld [vmem:[#allocation5] ss:$16 sm:$0xc0]
        %v851 = vor.u32 %v849, %v850
        %852 = vset.pattern.permute.xlu0 16
        %853 = vperm.xlu0 %852, %v607
        %v854 = vpop.permute.xlu0 %853
        %v856 = vmul.f32 %v854, %v851
        %v857 = vadd.f32 %v844, %v856
        %s858 = scalar_lea.vmem [#allocation5], 1
        %v859 = vld [vmem:[%s858] ss:$16 sm:$0x3]
        %v860 = vld [vmem:[%s858] ss:$16 sm:$0xc]
        %v861 = vor.u32 %v859, %v860
        %v862 = vld [vmem:[%s858] ss:$16 sm:$0x30]
        %v863 = vor.u32 %v861, %v862
        %v864 = vld [vmem:[%s858] ss:$16 sm:$0xc0]
        %v865 = vor.u32 %v863, %v864
        %866 = vset.pattern.permute.xlu0 17
        %867 = vperm.xlu0 %866, %v607
        %v868 = vpop.permute.xlu0 %867
        %v870 = vmul.f32 %v868, %v865
        %v871 = vadd.f32 %v857, %v870
        %s872 = scalar_lea.vmem [#allocation5], 2
        %v873 = vld [vmem:[%s872] ss:$16 sm:$0x3]
        %v874 = vld [vmem:[%s872] ss:$16 sm:$0xc]
        %v875 = vor.u32 %v873, %v874
        %v876 = vld [vmem:[%s872] ss:$16 sm:$0x30]
        %v877 = vor.u32 %v875, %v876
        %v878 = vld [vmem:[%s872] ss:$16 sm:$0xc0]
        %v879 = vor.u32 %v877, %v878
        %880 = vset.pattern.permute.xlu0 18
        %881 = vperm.xlu0 %880, %v607
        %v882 = vpop.permute.xlu0 %881
        %v884 = vmul.f32 %v882, %v879
        %v885 = vadd.f32 %v871, %v884
        %s886 = scalar_lea.vmem [#allocation5], 3
        %v887 = vld [vmem:[%s886] ss:$16 sm:$0x3]
        %v888 = vld [vmem:[%s886] ss:$16 sm:$0xc]
        %v889 = vor.u32 %v887, %v888
        %v890 = vld [vmem:[%s886] ss:$16 sm:$0x30]
        %v891 = vor.u32 %v889, %v890
        %v892 = vld [vmem:[%s886] ss:$16 sm:$0xc0]
        %v893 = vor.u32 %v891, %v892
        %894 = vset.pattern.permute.xlu0 19
        %895 = vperm.xlu0 %894, %v607
        %v896 = vpop.permute.xlu0 %895
        %v898 = vmul.f32 %v896, %v893
        %v899 = vadd.f32 %v885, %v898
        %s900 = scalar_lea.vmem [#allocation5], 4
        %v901 = vld [vmem:[%s900] ss:$16 sm:$0x3]
        %v902 = vld [vmem:[%s900] ss:$16 sm:$0xc]
        %v903 = vor.u32 %v901, %v902
        %v904 = vld [vmem:[%s900] ss:$16 sm:$0x30]
        %v905 = vor.u32 %v903, %v904
        %v906 = vld [vmem:[%s900] ss:$16 sm:$0xc0]
        %v907 = vor.u32 %v905, %v906
        %908 = vset.pattern.permute.xlu0 20
        %909 = vperm.xlu0 %908, %v607
        %v910 = vpop.permute.xlu0 %909
        %v912 = vmul.f32 %v910, %v907
        %v913 = vadd.f32 %v899, %v912
        %s914 = scalar_lea.vmem [#allocation5], 5
        %v915 = vld [vmem:[%s914] ss:$16 sm:$0x3]
        %v916 = vld [vmem:[%s914] ss:$16 sm:$0xc]
        %v917 = vor.u32 %v915, %v916
        %v918 = vld [vmem:[%s914] ss:$16 sm:$0x30]
        %v919 = vor.u32 %v917, %v918
        %v920 = vld [vmem:[%s914] ss:$16 sm:$0xc0]
        %v921 = vor.u32 %v919, %v920
        %922 = vset.pattern.permute.xlu0 21
        %923 = vperm.xlu0 %922, %v607
        %v924 = vpop.permute.xlu0 %923
        %v926 = vmul.f32 %v924, %v921
        %v927 = vadd.f32 %v913, %v926
        %s928 = scalar_lea.vmem [#allocation5], 6
        %v929 = vld [vmem:[%s928] ss:$16 sm:$0x3]
        %v930 = vld [vmem:[%s928] ss:$16 sm:$0xc]
        %v931 = vor.u32 %v929, %v930
        %v932 = vld [vmem:[%s928] ss:$16 sm:$0x30]
        %v933 = vor.u32 %v931, %v932
        %v934 = vld [vmem:[%s928] ss:$16 sm:$0xc0]
        %v935 = vor.u32 %v933, %v934
        %936 = vset.pattern.permute.xlu0 22
        %937 = vperm.xlu0 %936, %v607
        %v938 = vpop.permute.xlu0 %937
        %v940 = vmul.f32 %v938, %v935
        %v941 = vadd.f32 %v927, %v940
        %s942 = scalar_lea.vmem [#allocation5], 7
        %v943 = vld [vmem:[%s942] ss:$16 sm:$0x3]
        %v944 = vld [vmem:[%s942] ss:$16 sm:$0xc]
        %v945 = vor.u32 %v943, %v944
        %v946 = vld [vmem:[%s942] ss:$16 sm:$0x30]
        %v947 = vor.u32 %v945, %v946
        %v948 = vld [vmem:[%s942] ss:$16 sm:$0xc0]
        %v949 = vor.u32 %v947, %v948
        %950 = vset.pattern.permute.xlu0 23
        %951 = vperm.xlu0 %950, %v607
        %v952 = vpop.permute.xlu0 %951
        %v954 = vmul.f32 %v952, %v949
        %v955 = vadd.f32 %v941, %v954
        %s956 = scalar_lea.vmem [#allocation5], 8
        %v957 = vld [vmem:[%s956] ss:$16 sm:$0x3]
        %v958 = vld [vmem:[%s956] ss:$16 sm:$0xc]
        %v959 = vor.u32 %v957, %v958
        %v960 = vld [vmem:[%s956] ss:$16 sm:$0x30]
        %v961 = vor.u32 %v959, %v960
        %v962 = vld [vmem:[%s956] ss:$16 sm:$0xc0]
        %v963 = vor.u32 %v961, %v962
        %964 = vset.pattern.permute.xlu0 24
        %965 = vperm.xlu0 %964, %v607
        %v966 = vpop.permute.xlu0 %965
        %v968 = vmul.f32 %v966, %v963
        %v969 = vadd.f32 %v955, %v968
        %s970 = scalar_lea.vmem [#allocation5], 9
        %v971 = vld [vmem:[%s970] ss:$16 sm:$0x3]
        %v972 = vld [vmem:[%s970] ss:$16 sm:$0xc]
        %v973 = vor.u32 %v971, %v972
        %v974 = vld [vmem:[%s970] ss:$16 sm:$0x30]
        %v975 = vor.u32 %v973, %v974
        %v976 = vld [vmem:[%s970] ss:$16 sm:$0xc0]
        %v977 = vor.u32 %v975, %v976
        %978 = vset.pattern.permute.xlu0 25
        %979 = vperm.xlu0 %978, %v607
        %v980 = vpop.permute.xlu0 %979
        %v982 = vmul.f32 %v980, %v977
        %v983 = vadd.f32 %v969, %v982
        %s984 = scalar_lea.vmem [#allocation5], 10
        %v985 = vld [vmem:[%s984] ss:$16 sm:$0x3]
        %v986 = vld [vmem:[%s984] ss:$16 sm:$0xc]
        %v987 = vor.u32 %v985, %v986
        %v988 = vld [vmem:[%s984] ss:$16 sm:$0x30]
        %v989 = vor.u32 %v987, %v988
        %v990 = vld [vmem:[%s984] ss:$16 sm:$0xc0]
        %v991 = vor.u32 %v989, %v990
        %992 = vset.pattern.permute.xlu0 26
        %993 = vperm.xlu0 %992, %v607
        %v994 = vpop.permute.xlu0 %993
        %v996 = vmul.f32 %v994, %v991
        %v997 = vadd.f32 %v983, %v996
        %s998 = scalar_lea.vmem [#allocation5], 11
        %v999 = vld [vmem:[%s998] ss:$16 sm:$0x3]
        %v1000 = vld [vmem:[%s998] ss:$16 sm:$0xc]
        %v1001 = vor.u32 %v999, %v1000
        %v1002 = vld [vmem:[%s998] ss:$16 sm:$0x30]
        %v1003 = vor.u32 %v1001, %v1002
        %v1004 = vld [vmem:[%s998] ss:$16 sm:$0xc0]
        %v1005 = vor.u32 %v1003, %v1004
        %1006 = vset.pattern.permute.xlu0 27
        %1007 = vperm.xlu0 %1006, %v607
        %v1008 = vpop.permute.xlu0 %1007
        %v1010 = vmul.f32 %v1008, %v1005
        %v1011 = vadd.f32 %v997, %v1010
        %s1012 = scalar_lea.vmem [#allocation5], 12
        %v1013 = vld [vmem:[%s1012] ss:$16 sm:$0x3]
        %v1014 = vld [vmem:[%s1012] ss:$16 sm:$0xc]
        %v1015 = vor.u32 %v1013, %v1014
        %v1016 = vld [vmem:[%s1012] ss:$16 sm:$0x30]
        %v1017 = vor.u32 %v1015, %v1016
        %v1018 = vld [vmem:[%s1012] ss:$16 sm:$0xc0]
        %v1019 = vor.u32 %v1017, %v1018
        %1020 = vset.pattern.permute.xlu0 28
        %1021 = vperm.xlu0 %1020, %v607
        %v1022 = vpop.permute.xlu0 %1021
        %v1024 = vmul.f32 %v1022, %v1019
        %v1025 = vadd.f32 %v1011, %v1024
        %s1026 = scalar_lea.vmem [#allocation5], 13
        %v1027 = vld [vmem:[%s1026] ss:$16 sm:$0x3]
        %v1028 = vld [vmem:[%s1026] ss:$16 sm:$0xc]
        %v1029 = vor.u32 %v1027, %v1028
        %v1030 = vld [vmem:[%s1026] ss:$16 sm:$0x30]
        %v1031 = vor.u32 %v1029, %v1030
        %v1032 = vld [vmem:[%s1026] ss:$16 sm:$0xc0]
        %v1033 = vor.u32 %v1031, %v1032
        %1034 = vset.pattern.permute.xlu0 29
        %1035 = vperm.xlu0 %1034, %v607
        %v1036 = vpop.permute.xlu0 %1035
        %v1038 = vmul.f32 %v1036, %v1033
        %v1039 = vadd.f32 %v1025, %v1038
        %s1040 = scalar_lea.vmem [#allocation5], 14
        %v1041 = vld [vmem:[%s1040] ss:$16 sm:$0x3]
        %v1042 = vld [vmem:[%s1040] ss:$16 sm:$0xc]
        %v1043 = vor.u32 %v1041, %v1042
        %v1044 = vld [vmem:[%s1040] ss:$16 sm:$0x30]
        %v1045 = vor.u32 %v1043, %v1044
        %v1046 = vld [vmem:[%s1040] ss:$16 sm:$0xc0]
        %v1047 = vor.u32 %v1045, %v1046
        %1048 = vset.pattern.permute.xlu0 30
        %1049 = vperm.xlu0 %1048, %v607
        %v1050 = vpop.permute.xlu0 %1049
        %v1052 = vmul.f32 %v1050, %v1047
        %v1053 = vadd.f32 %v1039, %v1052
        %s1054 = scalar_lea.vmem [#allocation5], 15
        %v1055 = vld [vmem:[%s1054] ss:$16 sm:$0x3]
        %v1056 = vld [vmem:[%s1054] ss:$16 sm:$0xc]
        %v1057 = vor.u32 %v1055, %v1056
        %v1058 = vld [vmem:[%s1054] ss:$16 sm:$0x30]
        %v1059 = vor.u32 %v1057, %v1058
        %v1060 = vld [vmem:[%s1054] ss:$16 sm:$0xc0]
        %v1061 = vor.u32 %v1059, %v1060
        %1062 = vset.pattern.permute.xlu0 31
        %1063 = vperm.xlu0 %1062, %v607
        %v1064 = vpop.permute.xlu0 %1063
        %v1066 = vmul.f32 %v1064, %v1061
        %v1067 = vadd.f32 %v1053, %v1066
        %v1068 = vsub.f32 0.0, %v441
        %v1069 = vmul.f32 %v1068, 1.442695
        %v1070 = vpow.pop %v1069
        %v1071 = vadd.f32 %v1070, 1.0
        %v1072 = vrcp.pop %v1071
        %v1073 = vmul.f32 %v1071, %v1072
        %v1074 = vsub.f32 1.0, %v1073
        %v1075 = vmul.f32 %v1072, %v1074
        %v1076 = vadd.f32 %v1072, %v1075
        %vm1077 = vweird.f32 %v1071
        %vm1078 = vweird.f32 %v1072
        %vm1079 = vmor %vm1077, %vm1078
        %v1080 = vsel %vm1079, %v1072, %v1076
        %v1081 = vand.u32 2147483647, %v1071
        %vm1082 = vcmp.eq.f32.partialorder %v1081, 8.507059e+37
        %v1083 = vand.u32 %v1071, 2147483648
        %v1084 = vor.u32 1.1754944e-38, %v1083
        %v1085 = vsel %vm1082, %v1084, %v1080
        %v1086 = vmul.f32 1.0, %v1085
        %v1087 = vmul.f32 %v441, %v1086
        %v1088 = vmul.f32 %v1067, %v1087
        %v1089 = vpack.c.bf16 %v1088, %v1088
        %v1090 = vld [vmem:[%s8] sm:$0xf]
        %v1091 = vld [vmem:[%s8 + $0x4] sm:$0xf]
        %v1092 = vld [vmem:[%s8 + $0x8] sm:$0xf]
        %v1093 = vld [vmem:[%s8 + $0xc] sm:$0xf]
        %v1094 = vld [vmem:[%s8 + $0x10] sm:$0xf]
        %v1095 = vld [vmem:[%s8 + $0x14] sm:$0xf]
        %v1096 = vld [vmem:[%s8 + $0x18] sm:$0xf]
        %v1097 = vld [vmem:[%s8 + $0x1c] sm:$0xf]
        %v1098 = vld [vmem:[%s8 + $0x20] sm:$0xf]
        %v1099 = vld [vmem:[%s8 + $0x24] sm:$0xf]
        %v1100 = vld [vmem:[%s8 + $0x28] sm:$0xf]
        %v1101 = vld [vmem:[%s8 + $0x2c] sm:$0xf]
        %v1102 = vld [vmem:[%s8 + $0x30] sm:$0xf]
        %v1103 = vld [vmem:[%s8 + $0x34] sm:$0xf]
        %v1104 = vld [vmem:[%s8 + $0x38] sm:$0xf]
        %v1105 = vld [vmem:[%s8 + $0x3c] sm:$0xf]
        %v1122 = vunpack.c.l.b16 %v1090
        %v1123 = vunpack.c.l.b16 %v1091
        %v1124 = vunpack.c.l.b16 %v1092
        %v1125 = vunpack.c.l.b16 %v1093
        %v1126 = vunpack.c.l.b16 %v1094
        %v1127 = vunpack.c.l.b16 %v1095
        %v1128 = vunpack.c.l.b16 %v1096
        %v1129 = vunpack.c.l.b16 %v1097
        %v1130 = vunpack.c.l.b16 %v1098
        %v1131 = vunpack.c.l.b16 %v1099
        %v1132 = vunpack.c.l.b16 %v1100
        %v1133 = vunpack.c.l.b16 %v1101
        %v1134 = vunpack.c.l.b16 %v1102
        %v1135 = vunpack.c.l.b16 %v1103
        %v1136 = vunpack.c.l.b16 %v1104
        %v1137 = vunpack.c.l.b16 %v1105
        %v1138 = vpack.c.b16 %v1123, %v1122
        %v1139 = vpack.c.b16 %v1125, %v1124
        %v1140 = vpack.c.b16 %v1127, %v1126
        %v1141 = vpack.c.b16 %v1129, %v1128
        %v1142 = vpack.c.b16 %v1131, %v1130
        %v1143 = vpack.c.b16 %v1133, %v1132
        %v1144 = vpack.c.b16 %v1135, %v1134
        %v1145 = vpack.c.b16 %v1137, %v1136
        %1154 = vmatpush.bf16.msra.mxu0 %v1145
        %1155 = vmatpush.bf16.msra.mxu0 %v1144
        %1156 = vmatpush.bf16.msra.mxu0 %v1143
        %1157 = vmatpush.bf16.msra.mxu0 %v1142
        %1158 = vmatpush.bf16.msra.mxu0 %v1141
        %1159 = vmatpush.bf16.msra.mxu0 %v1140
        %1160 = vmatpush.bf16.msra.mxu0 %v1139
        %1161 = vmatpush.bf16.msra.mxu0 %v1138
        %1162 = vmatmul.bf16.gmra.mxu0 %v1089
        %v1163 = vpop.f32.mrf.mxu0
        %v1164 = vadd.f32 0.0, %v1163
        %v1165 = vpop.f32.mrf.mxu0
        %1166 = vdwg.mxu0
        %1167 = vst [vmem:[%s347] sm:$0xff] %v1164
        %s1168 = sand.u32 %s241, 1
        %s1169 = scalar_lea.sflag [#allocation8], %s1168
        %s1170 = sand.u32 %s241, 1
        %s1171 = smul.addr %s1170, 8
        %s1172 = scalar_lea.vmem [#allocation7], %s1171
        // Predicated region
        $region68: #{mamba_block_forward.1} parent=55 // pred_check
          %p1173 = pneg %p251
        $region69: #{mamba_block_forward.1} parent=55 // pred_check_branch
          %1175 = sbr.rel (%p1173) target = $region71
        $region70: #{mamba_block_forward.1} parent=55 // pred_region
          %1177 = vsyncadd %s1169, 0
          %s1178 = smul.addr %s27, 2
          %s1179 = sadd.s32 %s28, %s1178
          %s1180 = smul.addr %s1179, 8
          %s1181 = scalar_lea.hbm %s9, %s1180
          %s1183 = sshll.u32 %s1172, 4
          %s1184 = int_to_ptr.vmem [resolvable:$true] %s1183
          %s1185 = sshll.u32 %s1181, 4
          %s1186 = int_to_ptr.hbm [resolvable:$true] %s1185
          %1188 = dma.vmem_to_hbm [thread:$0]  %s1184, 128, %s1186, %s1169
        $region71: #{mamba_block_forward.1} parent=55 // pred_fallthru
          _
      $region56: #{mamba_block_forward.1} parent=5 // pred_fallthru
        _
      %p1189 = scmp.le.s32.totalorder 2, %s18
      // Predicated region
      $region72: #{mamba_block_forward.1} parent=5 // pred_check
        %p1190 = pneg %p1189
      $region73: #{mamba_block_forward.1} parent=5 // pred_check_branch
        %1192 = sbr.rel (%p1190) target = $region75
      $region74: #{mamba_block_forward.1} parent=5 // pred_region
        %s1193 = ssub.s32 %s18, 2
        // Predicated region
        $region76: #{mamba_block_forward.1} parent=74 // pred_check
          %p1194 = pneg %p257
        $region77: #{mamba_block_forward.1} parent=74 // pred_check_branch
          %1196 = sbr.rel (%p1194) target = $region79
        $region78: #{mamba_block_forward.1} parent=74 // pred_region
          %s1197 = sand.u32 %s242, 1
          %s1198 = scalar_lea.sflag [#allocation8], %s1197
          %s1199 = sand.u32 %s242, 1
          %s1200 = smul.addr %s1199, 8
          %s1201 = scalar_lea.vmem [#allocation7], %s1200
          %1203 = dma.done %s1198, 128
        $region79: #{mamba_block_forward.1} parent=74 // pred_fallthru
          _
      $region75: #{mamba_block_forward.1} parent=5 // pred_fallthru
        _
    $region6: #{mamba_block_forward.1} parent=1 // loop_footer
      %s22 = sadd.s32 1, %s18
    $region7: #{mamba_block_forward.1} parent=1 // loop_footer_branch
      %17 = sbr.rel target = $region3
    $region8: #{mamba_block_forward.1} parent=1 // loop_exit
      _
    %1204 = vsyncpa [#allocation8], 1
    %s1205 = scalar_lea.sflag [#allocation8], 1
    %1206 = vsyncpa %s1205, 1

</llo_original>
